<compile_context>
chip_gen: v6e
topology: v6e:2x2x1
jax: 0.10.0
libtpu: 0.0.40
codegen_flags: <defaults>
</compile_context>

<pallas_src>
import functools

import jax
import jax.numpy as jnp
from jax.experimental import pallas as pl
from jax.experimental.pallas import tpu as pltpu


def _round_up(v, m):
    return (v + m - 1) // m * m


def _aspp_dw_kernel(x_ref, w_ref, t_ref, o_ref, shift_ref, *, d, row_blk):
    """One (channel-block, batch, H-tile) grid step.

    x_ref    : (1, TH + 2d, W_in, CB)   zero-padded NHWC input strip
    w_ref    : (3, 3, CB)               depthwise taps, BN scale pre-folded
    t_ref    : (1, 1, CB)               BN shift (beta - mean * scale)
    o_ref    : (1, TH, W_out, CB)
    shift_ref: (2, TH + 2d, W_out, CB)  scratch: kw=1,2 W-shifted strips
    """
    th = o_ref.shape[1]
    w_out = o_ref.shape[2]
    cb = x_ref.shape[-1]

    # --- Hoist the W-axis (sublane) shifts out of the tap loop --------------
    # A W slice at an offset that is not a multiple of 8 forces a sublane
    # realignment copy; do it once per kw (kw=0 is offset 0 -> aligned) instead
    # of once per (kh, kw) tap.
    for kw in (1, 2):
        shift_ref[kw - 1] = x_ref[0, :, kw * d:kw * d + w_out, :]

    # Per-tap weight vectors and BN shift, loaded once per block.
    wts = [[w_ref[kh, kw, :].astype(jnp.float32) for kw in range(3)]
           for kh in range(3)]
    tb = t_ref[0, 0, :].astype(jnp.float32)

    # --- 9-tap depthwise dilated conv, small row chunks ----------------------
    r0 = 0
    while r0 < th:                           # static (trace-time) loop
        rb = min(row_blk, th - r0)
        acc = jnp.zeros((rb, w_out, cb), jnp.float32)
        for kh in range(3):
            h0 = r0 + kh * d                 # H is an outer dim: cheap offsets
            for kw in range(3):
                if kw == 0:
                    win = x_ref[0, h0:h0 + rb, 0:w_out, :]
                else:
                    win = shift_ref[kw - 1, h0:h0 + rb, :, :]
                acc = acc + win.astype(jnp.float32) * wts[kh][kw]
        y = acc + tb                                        # folded BN shift
        o_ref[0, r0:r0 + rb, :, :] = (y * jax.nn.sigmoid(y)).astype(o_ref.dtype)
        r0 += rb


def aspp_conv_forward_nhwc(x_nhwc, weight, gamma, beta, running_mean,
                           running_var, *, d, eps=1e-5, block_c=128,
                           vmem_budget_bytes=20 * 2**20):
    """ASPPConv forward on an NHWC input; returns NHWC output.

    BatchNorm uses running statistics (inference mode) folded into a
    per-channel scale/shift.  bf16 inputs are supported (f32 accumulation).
    """
    N, H, W, C = x_nhwc.shape
    assert weight.shape == (C, 1, 3, 3), (
        "depthwise conv (groups == out_ch) expects in_ch == out_ch")
    # TODO(synk): grouped conv with in_ch != out_ch (groups=out_ch) needs
    # per-group channel reductions and is not handled here.

    in_dtype = x_nhwc.dtype
    itemsize = jnp.dtype(in_dtype).itemsize

    # --- Fold inference BatchNorm into per-channel scale/shift ---------------
    scale = gamma / jnp.sqrt(running_var + eps)                         # (C,)
    shift = beta - running_mean * scale                                 # (C,)
    w_f = jnp.transpose(weight[:, 0, :, :] * scale[:, None, None],
                        (1, 2, 0)).astype(jnp.float32)                  # (3,3,C)

    # --- Padding so every block is lane/sublane dense ------------------------
    c_pad = _round_up(C, 128)            # lane-dense stores, ragged C handled
    c_blk = min(block_c, c_pad)
    if c_pad % c_blk:
        c_blk = 128
    nc = c_pad // c_blk
    w_out = _round_up(W, 8)              # sublane-aligned output rows
    w_in = _round_up(w_out + 2 * d, 8)   # halo'd, sublane-aligned input rows

    # --- Choose the H tile from an explicit VMEM budget ----------------------
    def step_bytes(tile_h):
        th_in = tile_h + 2 * d
        return (2 * th_in * w_in * c_blk * itemsize       # input block x2 bufs
                + 2 * tile_h * w_out * c_blk * itemsize   # output block x2 bufs
                + 2 * th_in * w_out * c_blk * itemsize    # kw-shift scratch
                + 16 * c_blk * 4)                         # weights + shift

    if step_bytes(H) <= vmem_budget_bytes:
        tile_h = H                       # small frame: no spatial tiling needed
    else:
        tile_h = 8
        for cand in (256, 128, 64, 32, 16, 8):
            if step_bytes(cand) <= vmem_budget_bytes:
                tile_h = cand
                break
    h_pad = _round_up(H, tile_h)
    nh = h_pad // tile_h
    th_in = tile_h + 2 * d

    # --- Zero halo + alignment padding, once, in HBM -------------------------
    xp = jnp.pad(x_nhwc, ((0, 0),
                          (d, h_pad - H + d),
                          (d, w_in - W - d),
                          (0, c_pad - C)))
    w_f = jnp.pad(w_f, ((0, 0), (0, 0), (0, c_pad - C)))
    t = jnp.pad(shift.astype(jnp.float32), (0, c_pad - C)).reshape(1, 1, c_pad)

    # --- Input BlockSpec: full frame, or H-tiled with a 2d-row halo ----------
    if nh == 1:
        x_spec = pl.BlockSpec((1, th_in, w_in, c_blk),
                              lambda c, n, h: (n, 0, 0, c))
    else:
        # pl.Element: the index_map returns an *element* offset along H, so
        # consecutive tiles overlap by the 2d halo rows.
        x_spec = pl.BlockSpec((1, pl.Element(th_in), w_in, c_blk),
                              lambda c, n, h: (n, h * tile_h, 0, c))

    # Keep the per-chunk f32 accumulator ~<=128 KiB so it stays vreg-friendly.
    row_blk = max(1, min(tile_h, (128 * 1024) // (w_out * c_blk * 4)))

    out = pl.pallas_call(
        functools.partial(_aspp_dw_kernel, d=d, row_blk=row_blk),
        out_shape=jax.ShapeDtypeStruct((N, h_pad, w_out, c_pad), in_dtype),
        grid_spec=pltpu.PrefetchScalarGridSpec(
            num_scalar_prefetch=0,
            # Channel axis outermost: weight/shift blocks keep a constant
            # block index across all inner (batch, H-tile) steps.
            grid=(nc, N, nh),
            in_specs=[
                x_spec,
                pl.BlockSpec((3, 3, c_blk), lambda c, n, h: (0, 0, c)),
                pl.BlockSpec((1, 1, c_blk), lambda c, n, h: (0, 0, c)),
            ],
            out_specs=pl.BlockSpec((1, tile_h, w_out, c_blk),
                                   lambda c, n, h: (n, h, 0, c)),
            scratch_shapes=[pltpu.VMEM((2, th_in, w_out, c_blk), in_dtype)],
        ),
        compiler_params=pltpu.CompilerParams(
            dimension_semantics=("parallel", "parallel", "parallel"),
            vmem_limit_bytes=int(min(64 * 2**20,
                                     max(2 * step_bytes(tile_h), 32 * 2**20))),
        ),
    )(xp, w_f, t)

    return out[:, :H, :W, :C]


def aspp_conv_forward(x, weight, gamma, beta, running_mean, running_var, *,
                      d, eps=1e-5, **kwargs):
    """NCHW entry point matching the PyTorch module; x: (N, C, H, W).

    If the surrounding graph is already NHWC, call aspp_conv_forward_nhwc
    directly and skip these two layout passes.
    """
    x_nhwc = jnp.transpose(x, (0, 2, 3, 1))
    out = aspp_conv_forward_nhwc(x_nhwc, weight, gamma, beta, running_mean,
                                 running_var, d=d, eps=eps, **kwargs)
    return jnp.transpose(out, (0, 3, 1, 2))


def aspp_conv_reference(x, weight, gamma, beta, running_mean, running_var, *,
                        d, eps=1e-5):
    y = jax.lax.conv_general_dilated(
        x, weight, window_strides=(1, 1), padding=((d, d), (d, d)),
        rhs_dilation=(d, d), dimension_numbers=("NCHW", "OIHW", "NCHW"),
        feature_group_count=x.shape[1])
    scale = gamma / jnp.sqrt(running_var + eps)
    shift = beta - running_mean * scale
    y = y * scale[None, :, None, None] + shift[None, :, None, None]
    return y * jax.nn.sigmoid(y)


if __name__ == "__main__":
    N, C, H, W = 2, 4, 16, 16
    d = 2  # dilation / padding

    key = jax.random.PRNGKey(0)
    kx, kw, kg, kb, km, kv = jax.random.split(key, 6)

    x = jax.random.normal(kx, (N, C, H, W), dtype=jnp.float32)
    weight = 0.1 * jax.random.normal(kw, (C, 1, 3, 3), dtype=jnp.float32)
    gamma = 1.0 + 0.1 * jax.random.normal(kg, (C,), dtype=jnp.float32)
    beta = 0.1 * jax.random.normal(kb, (C,), dtype=jnp.float32)
    running_mean = 0.1 * jax.random.normal(km, (C,), dtype=jnp.float32)
    running_var = jax.random.uniform(kv, (C,), dtype=jnp.float32,
                                     minval=0.5, maxval=1.5)

    out = aspp_conv_forward(x, weight, gamma, beta, running_mean, running_var,
                            d=d)
    jax.block_until_ready(out)

    ref = aspp_conv_reference(x, weight, gamma, beta, running_mean, running_var,
                              d=d)
    assert out.shape == (N, C, H, W)
    assert jnp.allclose(out, ref, atol=1e-5, rtol=1e-5), "mismatch vs reference"

    print("KERNEL_OK")
</pallas_src>

<mosaic_0001>
module attributes {stable_mosaic.version = 11 : i64} {
  func.func @_aspp_dw_kernel(%arg0: i32, %arg1: i32, %arg2: i32, %arg3: memref<1x20x24x128xf32, #tpu.memory_space<vmem>>, %arg4: memref<3x3x128xf32, #tpu.memory_space<vmem>>, %arg5: memref<1x1x128xf32, #tpu.memory_space<vmem>>, %arg6: memref<1x16x16x128xf32, #tpu.memory_space<vmem>>, %arg7: memref<2x20x16x128xf32, #tpu.memory_space<vmem>>) attributes {dimension_semantics = [#tpu.dimension_semantics<parallel>, #tpu.dimension_semantics<parallel>, #tpu.dimension_semantics<parallel>], iteration_bounds = array<i64: 1, 2, 1>, scalar_prefetch = 0 : i64, scratch_operands = 1 : i64, tpu.core_type = #tpu.core_type<tc>, window_params = [{transform_indices = @transform_0, window_bounds = array<i64: 1, 20, 24, 128>}, {transform_indices = @transform_1, window_bounds = array<i64: 3, 3, 128>}, {transform_indices = @transform_2, window_bounds = array<i64: 1, 1, 128>}, {transform_indices = @transform_3, window_bounds = array<i64: 1, 16, 16, 128>}]} {
    %c0 = arith.constant 0 : index
    %c0_0 = arith.constant 0 : index
    %c2 = arith.constant 2 : index
    %c0_1 = arith.constant 0 : index
    %0 = vector.load %arg3[%c0, %c0_0, %c2, %c0_1] : memref<1x20x24x128xf32, #tpu.memory_space<vmem>>, vector<1x20x16x128xf32>
    %1 = vector.shape_cast %0 : vector<1x20x16x128xf32> to vector<20x16x128xf32>
    %c0_2 = arith.constant 0 : index
    %c0_3 = arith.constant 0 : index
    %c0_4 = arith.constant 0 : index
    %c0_5 = arith.constant 0 : index
    %2 = vector.load %arg7[%c0_2, %c0_3, %c0_4, %c0_5] : memref<2x20x16x128xf32, #tpu.memory_space<vmem>>, vector<1x20x16x128xf32>
    %3 = vector.shape_cast %2 : vector<1x20x16x128xf32> to vector<20x16x128xf32>
    %4 = vector.shape_cast %1 : vector<20x16x128xf32> to vector<1x20x16x128xf32>
    tpu.vector_store %arg7[%c0_2, %c0_3, %c0_4, %c0_5], %4 {strides = array<i32>} : memref<2x20x16x128xf32, #tpu.memory_space<vmem>>, vector<1x20x16x128xf32>,
    %c0_6 = arith.constant 0 : index
    %c0_7 = arith.constant 0 : index
    %c4 = arith.constant 4 : index
    %c0_8 = arith.constant 0 : index
    %5 = vector.load %arg3[%c0_6, %c0_7, %c4, %c0_8] : memref<1x20x24x128xf32, #tpu.memory_space<vmem>>, vector<1x20x16x128xf32>
    %6 = vector.shape_cast %5 : vector<1x20x16x128xf32> to vector<20x16x128xf32>
    %c1 = arith.constant 1 : index
    %c0_9 = arith.constant 0 : index
    %c0_10 = arith.constant 0 : index
    %c0_11 = arith.constant 0 : index
    %7 = vector.load %arg7[%c1, %c0_9, %c0_10, %c0_11] : memref<2x20x16x128xf32, #tpu.memory_space<vmem>>, vector<1x20x16x128xf32>
    %8 = vector.shape_cast %7 : vector<1x20x16x128xf32> to vector<20x16x128xf32>
    %9 = vector.shape_cast %6 : vector<20x16x128xf32> to vector<1x20x16x128xf32>
    tpu.vector_store %arg7[%c1, %c0_9, %c0_10, %c0_11], %9 {strides = array<i32>} : memref<2x20x16x128xf32, #tpu.memory_space<vmem>>, vector<1x20x16x128xf32>,
    %c0_12 = arith.constant 0 : index
    %c0_13 = arith.constant 0 : index
    %c0_14 = arith.constant 0 : index
    %10 = vector.load %arg4[%c0_12, %c0_13, %c0_14] : memref<3x3x128xf32, #tpu.memory_space<vmem>>, vector<1x1x128xf32>
    %11 = vector.shape_cast %10 : vector<1x1x128xf32> to vector<128xf32>
    %c0_15 = arith.constant 0 : index
    %c1_16 = arith.constant 1 : index
    %c0_17 = arith.constant 0 : index
    %12 = vector.load %arg4[%c0_15, %c1_16, %c0_17] : memref<3x3x128xf32, #tpu.memory_space<vmem>>, vector<1x1x128xf32>
    %13 = vector.shape_cast %12 : vector<1x1x128xf32> to vector<128xf32>
    %c0_18 = arith.constant 0 : index
    %c2_19 = arith.constant 2 : index
    %c0_20 = arith.constant 0 : index
    %14 = vector.load %arg4[%c0_18, %c2_19, %c0_20] : memref<3x3x128xf32, #tpu.memory_space<vmem>>, vector<1x1x128xf32>
    %15 = vector.shape_cast %14 : vector<1x1x128xf32> to vector<128xf32>
    %c1_21 = arith.constant 1 : index
    %c0_22 = arith.constant 0 : index
    %c0_23 = arith.constant 0 : index
    %16 = vector.load %arg4[%c1_21, %c0_22, %c0_23] : memref<3x3x128xf32, #tpu.memory_space<vmem>>, vector<1x1x128xf32>
    %17 = vector.shape_cast %16 : vector<1x1x128xf32> to vector<128xf32>
    %c1_24 = arith.constant 1 : index
    %c1_25 = arith.constant 1 : index
    %c0_26 = arith.constant 0 : index
    %18 = vector.load %arg4[%c1_24, %c1_25, %c0_26] : memref<3x3x128xf32, #tpu.memory_space<vmem>>, vector<1x1x128xf32>
    %19 = vector.shape_cast %18 : vector<1x1x128xf32> to vector<128xf32>
    %c1_27 = arith.constant 1 : index
    %c2_28 = arith.constant 2 : index
    %c0_29 = arith.constant 0 : index
    %20 = vector.load %arg4[%c1_27, %c2_28, %c0_29] : memref<3x3x128xf32, #tpu.memory_space<vmem>>, vector<1x1x128xf32>
    %21 = vector.shape_cast %20 : vector<1x1x128xf32> to vector<128xf32>
    %c2_30 = arith.constant 2 : index
    %c0_31 = arith.constant 0 : index
    %c0_32 = arith.constant 0 : index
    %22 = vector.load %arg4[%c2_30, %c0_31, %c0_32] : memref<3x3x128xf32, #tpu.memory_space<vmem>>, vector<1x1x128xf32>
    %23 = vector.shape_cast %22 : vector<1x1x128xf32> to vector<128xf32>
    %c2_33 = arith.constant 2 : index
    %c1_34 = arith.constant 1 : index
    %c0_35 = arith.constant 0 : index
    %24 = vector.load %arg4[%c2_33, %c1_34, %c0_35] : memref<3x3x128xf32, #tpu.memory_space<vmem>>, vector<1x1x128xf32>
    %25 = vector.shape_cast %24 : vector<1x1x128xf32> to vector<128xf32>
    %c2_36 = arith.constant 2 : index
    %c2_37 = arith.constant 2 : index
    %c0_38 = arith.constant 0 : index
    %26 = vector.load %arg4[%c2_36, %c2_37, %c0_38] : memref<3x3x128xf32, #tpu.memory_space<vmem>>, vector<1x1x128xf32>
    %27 = vector.shape_cast %26 : vector<1x1x128xf32> to vector<128xf32>
    %c0_39 = arith.constant 0 : index
    %c0_40 = arith.constant 0 : index
    %c0_41 = arith.constant 0 : index
    %28 = vector.load %arg5[%c0_39, %c0_40, %c0_41] : memref<1x1x128xf32, #tpu.memory_space<vmem>>, vector<1x1x128xf32>
    %29 = vector.shape_cast %28 : vector<1x1x128xf32> to vector<128xf32>
    %cst = arith.constant 0.000000e+00 : f32
    %30 = vector.broadcast %cst : f32 to vector<16x16x128xf32>
    %c0_42 = arith.constant 0 : index
    %c0_43 = arith.constant 0 : index
    %c0_44 = arith.constant 0 : index
    %c0_45 = arith.constant 0 : index
    %31 = vector.load %arg3[%c0_42, %c0_43, %c0_44, %c0_45] : memref<1x20x24x128xf32, #tpu.memory_space<vmem>>, vector<1x16x16x128xf32>
    %32 = vector.shape_cast %31 : vector<1x16x16x128xf32> to vector<16x16x128xf32>
    %33 = vector.shape_cast %11 : vector<128xf32> to vector<1x1x128xf32>
    %34 = vector.broadcast %33 : vector<1x1x128xf32> to vector<16x16x128xf32>
    %35 = arith.mulf %32, %34 : vector<16x16x128xf32>
    %36 = arith.addf %30, %35 : vector<16x16x128xf32>
    %c0_46 = arith.constant 0 : index
    %c0_47 = arith.constant 0 : index
    %c0_48 = arith.constant 0 : index
    %c0_49 = arith.constant 0 : index
    %37 = vector.load %arg7[%c0_46, %c0_47, %c0_48, %c0_49] : memref<2x20x16x128xf32, #tpu.memory_space<vmem>>, vector<1x16x16x128xf32>
    %38 = vector.shape_cast %37 : vector<1x16x16x128xf32> to vector<16x16x128xf32>
    %39 = vector.shape_cast %13 : vector<128xf32> to vector<1x1x128xf32>
    %40 = vector.broadcast %39 : vector<1x1x128xf32> to vector<16x16x128xf32>
    %41 = arith.mulf %38, %40 : vector<16x16x128xf32>
    %42 = arith.addf %36, %41 : vector<16x16x128xf32>
    %c1_50 = arith.constant 1 : index
    %c0_51 = arith.constant 0 : index
    %c0_52 = arith.constant 0 : index
    %c0_53 = arith.constant 0 : index
    %43 = vector.load %arg7[%c1_50, %c0_51, %c0_52, %c0_53] : memref<2x20x16x128xf32, #tpu.memory_space<vmem>>, vector<1x16x16x128xf32>
    %44 = vector.shape_cast %43 : vector<1x16x16x128xf32> to vector<16x16x128xf32>
    %45 = vector.shape_cast %15 : vector<128xf32> to vector<1x1x128xf32>
    %46 = vector.broadcast %45 : vector<1x1x128xf32> to vector<16x16x128xf32>
    %47 = arith.mulf %44, %46 : vector<16x16x128xf32>
    %48 = arith.addf %42, %47 : vector<16x16x128xf32>
    %c0_54 = arith.constant 0 : index
    %c2_55 = arith.constant 2 : index
    %c0_56 = arith.constant 0 : index
    %c0_57 = arith.constant 0 : index
    %49 = vector.load %arg3[%c0_54, %c2_55, %c0_56, %c0_57] : memref<1x20x24x128xf32, #tpu.memory_space<vmem>>, vector<1x16x16x128xf32>
    %50 = vector.shape_cast %49 : vector<1x16x16x128xf32> to vector<16x16x128xf32>
    %51 = vector.shape_cast %17 : vector<128xf32> to vector<1x1x128xf32>
    %52 = vector.broadcast %51 : vector<1x1x128xf32> to vector<16x16x128xf32>
    %53 = arith.mulf %50, %52 : vector<16x16x128xf32>
    %54 = arith.addf %48, %53 : vector<16x16x128xf32>
    %c0_58 = arith.constant 0 : index
    %c2_59 = arith.constant 2 : index
    %c0_60 = arith.constant 0 : index
    %c0_61 = arith.constant 0 : index
    %55 = vector.load %arg7[%c0_58, %c2_59, %c0_60, %c0_61] : memref<2x20x16x128xf32, #tpu.memory_space<vmem>>, vector<1x16x16x128xf32>
    %56 = vector.shape_cast %55 : vector<1x16x16x128xf32> to vector<16x16x128xf32>
    %57 = vector.shape_cast %19 : vector<128xf32> to vector<1x1x128xf32>
    %58 = vector.broadcast %57 : vector<1x1x128xf32> to vector<16x16x128xf32>
    %59 = arith.mulf %56, %58 : vector<16x16x128xf32>
    %60 = arith.addf %54, %59 : vector<16x16x128xf32>
    %c1_62 = arith.constant 1 : index
    %c2_63 = arith.constant 2 : index
    %c0_64 = arith.constant 0 : index
    %c0_65 = arith.constant 0 : index
    %61 = vector.load %arg7[%c1_62, %c2_63, %c0_64, %c0_65] : memref<2x20x16x128xf32, #tpu.memory_space<vmem>>, vector<1x16x16x128xf32>
    %62 = vector.shape_cast %61 : vector<1x16x16x128xf32> to vector<16x16x128xf32>
    %63 = vector.shape_cast %21 : vector<128xf32> to vector<1x1x128xf32>
    %64 = vector.broadcast %63 : vector<1x1x128xf32> to vector<16x16x128xf32>
    %65 = arith.mulf %62, %64 : vector<16x16x128xf32>
    %66 = arith.addf %60, %65 : vector<16x16x128xf32>
    %c0_66 = arith.constant 0 : index
    %c4_67 = arith.constant 4 : index
    %c0_68 = arith.constant 0 : index
    %c0_69 = arith.constant 0 : index
    %67 = vector.load %arg3[%c0_66, %c4_67, %c0_68, %c0_69] : memref<1x20x24x128xf32, #tpu.memory_space<vmem>>, vector<1x16x16x128xf32>
    %68 = vector.shape_cast %67 : vector<1x16x16x128xf32> to vector<16x16x128xf32>
    %69 = vector.shape_cast %23 : vector<128xf32> to vector<1x1x128xf32>
    %70 = vector.broadcast %69 : vector<1x1x128xf32> to vector<16x16x128xf32>
    %71 = arith.mulf %68, %70 : vector<16x16x128xf32>
    %72 = arith.addf %66, %71 : vector<16x16x128xf32>
    %c0_70 = arith.constant 0 : index
    %c4_71 = arith.constant 4 : index
    %c0_72 = arith.constant 0 : index
    %c0_73 = arith.constant 0 : index
    %73 = vector.load %arg7[%c0_70, %c4_71, %c0_72, %c0_73] : memref<2x20x16x128xf32, #tpu.memory_space<vmem>>, vector<1x16x16x128xf32>
    %74 = vector.shape_cast %73 : vector<1x16x16x128xf32> to vector<16x16x128xf32>
    %75 = vector.shape_cast %25 : vector<128xf32> to vector<1x1x128xf32>
    %76 = vector.broadcast %75 : vector<1x1x128xf32> to vector<16x16x128xf32>
    %77 = arith.mulf %74, %76 : vector<16x16x128xf32>
    %78 = arith.addf %72, %77 : vector<16x16x128xf32>
    %c1_74 = arith.constant 1 : index
    %c4_75 = arith.constant 4 : index
    %c0_76 = arith.constant 0 : index
    %c0_77 = arith.constant 0 : index
    %79 = vector.load %arg7[%c1_74, %c4_75, %c0_76, %c0_77] : memref<2x20x16x128xf32, #tpu.memory_space<vmem>>, vector<1x16x16x128xf32>
    %80 = vector.shape_cast %79 : vector<1x16x16x128xf32> to vector<16x16x128xf32>
    %81 = vector.shape_cast %27 : vector<128xf32> to vector<1x1x128xf32>
    %82 = vector.broadcast %81 : vector<1x1x128xf32> to vector<16x16x128xf32>
    %83 = arith.mulf %80, %82 : vector<16x16x128xf32>
    %84 = arith.addf %78, %83 : vector<16x16x128xf32>
    %85 = vector.shape_cast %29 : vector<128xf32> to vector<1x1x128xf32>
    %86 = vector.broadcast %85 : vector<1x1x128xf32> to vector<16x16x128xf32>
    %87 = arith.addf %84, %86 : vector<16x16x128xf32>
    %88 = arith.negf %87 : vector<16x16x128xf32>
    %89 = math.exp %88 : vector<16x16x128xf32>
    %cst_78 = arith.constant 1.000000e+00 : f32
    %90 = vector.broadcast %cst_78 : f32 to vector<16x16x128xf32>
    %91 = arith.addf %90, %89 : vector<16x16x128xf32>
    %92 = arith.divf %90, %91 : vector<16x16x128xf32>
    %93 = arith.mulf %87, %92 : vector<16x16x128xf32>
    %c0_79 = arith.constant 0 : index
    %c0_80 = arith.constant 0 : index
    %c0_81 = arith.constant 0 : index
    %c0_82 = arith.constant 0 : index
    %94 = vector.load %arg6[%c0_79, %c0_80, %c0_81, %c0_82] : memref<1x16x16x128xf32, #tpu.memory_space<vmem>>, vector<1x16x16x128xf32>
    %95 = vector.shape_cast %94 : vector<1x16x16x128xf32> to vector<16x16x128xf32>
    %96 = vector.shape_cast %93 : vector<16x16x128xf32> to vector<1x16x16x128xf32>
    tpu.vector_store %arg6[%c0_79, %c0_80, %c0_81, %c0_82], %96 {strides = array<i32>} : memref<1x16x16x128xf32, #tpu.memory_space<vmem>>, vector<1x16x16x128xf32>,
    return
  }
  func.func @transform_0(%arg0: i32, %arg1: i32, %arg2: i32) -> (i32, i32, i32, i32) {
    %c0_i32 = arith.constant 0 : i32
    %c0_i32_0 = arith.constant 0 : i32
    %c0_i32_1 = arith.constant 0 : i32
    return %arg1, %c0_i32, %c0_i32_0, %arg0 : i32, i32, i32, i32
  }
  func.func @transform_1(%arg0: i32, %arg1: i32, %arg2: i32) -> (i32, i32, i32) {
    %c0_i32 = arith.constant 0 : i32
    %c0_i32_0 = arith.constant 0 : i32
    %c0_i32_1 = arith.constant 0 : i32
    return %c0_i32, %c0_i32_0, %arg0 : i32, i32, i32
  }
  func.func @transform_2(%arg0: i32, %arg1: i32, %arg2: i32) -> (i32, i32, i32) {
    %c0_i32 = arith.constant 0 : i32
    %c0_i32_0 = arith.constant 0 : i32
    %c0_i32_1 = arith.constant 0 : i32
    return %c0_i32, %c0_i32_0, %arg0 : i32, i32, i32
  }
  func.func @transform_3(%arg0: i32, %arg1: i32, %arg2: i32) -> (i32, i32, i32, i32) {
    %c0_i32 = arith.constant 0 : i32
    %c0_i32_0 = arith.constant 0 : i32
    return %arg1, %arg2, %c0_i32, %arg0 : i32, i32, i32, i32
  }
}

</mosaic_0001>

<llo_original>
// kernel: tpu_custom_call.1
$region0: #{tpu_custom_call.1}
  #allocation0 [shape = 'u32[]', space=smem, size = 0x4, offset = 0x4, fixed_abs, tag = 'smem constant byte address 0x4 - core index']
  #allocation1 [shape = 'u32[144,128]{1,0:T(1,128)}', space=vmem, size = 0x12000, scoped, tag = 'internal scratch']
  #allocation2 [shape = 'f32[2,20,16,128]{3,2,1,0:T(8,128)}', space=vmem, size = 0x50000, scoped, tag = 'scratch operand']
  %s0 = inlined_call_operand.hbm [shape: f32[2,20,24,128], index: 0, kind: input, shape index: {}]
  %s1 = inlined_call_operand.hbm [shape: f32[3,3,128], index: 1, kind: input, shape index: {}]
  %s2 = inlined_call_operand.vmem [shape: f32[1,1,128], index: 2, kind: input, shape index: {}]
  %s3 = inlined_call_operand.hbm [shape: f32[2,16,16,128], index: 3, kind: output, shape index: {}]
  %s4 = sld [smem:[#allocation0]]
  $region53: #{tpu_custom_call.1} parent=0
    _
  %s6 = ssub.s32 1, %s4
  %s7 = scalar_select 0, %s6, %s4
  $region1: #{tpu_custom_call.1} parent=0
    #allocation3 [shape = 'u8[491520]{0}', space=vmem, size = 0x78000, scoped, tag = 'input window, operand 0']
    #allocation4 [shape = 's32[2]{0}', space=sflag, size = 0x8, scoped, tag = 'scoped memory for tpu_custom_call.1']
    #allocation5 [shape = 's32[2]{0}', space=sflag, size = 0x8, scoped, tag = 'scoped memory for tpu_custom_call.1']
    #allocation6 [shape = 'u8[6144]{0}', space=vmem, size = 0x1800, scoped, tag = 'input window, operand 1, single buffered']
    #allocation7 [shape = 's32[1]{0}', space=sflag, size = 0x4, scoped, tag = 'scoped memory for tpu_custom_call.1']
    #allocation8 [shape = 'u8[262144]{0}', space=vmem, size = 0x40000, scoped, tag = 'output window, operand 0']
    %8 = vsyncpa [#allocation4], 0
    %s9 = scalar_lea.sflag [#allocation4], 1
    %10 = vsyncpa %s9, 0
    %11 = vsyncpa [#allocation7], 0
    %12 = vsyncpa [#allocation5], 0
    %s13 = scalar_lea.sflag [#allocation5], 1
    %14 = vsyncpa %s13, 0
    loop: start=0, step=1, limit=4
    $region2: #{tpu_custom_call.1} parent=1 // loop_pre_header
      _
    $region3: #{tpu_custom_call.1} parent=1 // loop_header
      %s16 = sphi 0, %s20
      %p17 = scmp.ge.s32.totalorder %s16, 4
      %s23 = sphi 0, %s42
      %s24 = sphi 0, %s38
      %s25 = sphi 0, %s34
      %s26 = sphi 0, %s23
      %s27 = sphi 0, %s24
      %s28 = sphi 0, %s25
      %s29 = sphi 0, %s26
      %s30 = sphi 0, %s27
      %s31 = sphi 0, %s28
      %s47 = sphi 0, %s49
      %s50 = sphi 0, %s47
      %s51 = sphi 0, %s50
      %s67 = sphi 0, %s51
      %s73 = sphi 0, %s75
      %s76 = sphi 0, %s73
      %s77 = sphi 0, %s76
      %s93 = sphi 0, %s77
      %s99 = sphi 0, %s101
      %s102 = sphi 0, %s99
      %s103 = sphi 0, %s102
      %s119 = sphi 0, %s103
      %s129 = sphi 0, %s131
      %s132 = sphi 0, %s129
      %s133 = sphi 0, %s132
      %s149 = sphi 0, %s133
    $region4: #{tpu_custom_call.1} parent=1 // loop_header_branch
      %19 = sbr.rel (%p17) target = $region8
    $region5: #{tpu_custom_call.1} parent=1 // loop_body
      %s21 = ssub.s32 %s16, 1
      %s22 = ssub.s32 %s16, 2
      %s32 = sadd.s32 1, %s25
      %p33 = scmp.ge.s32.totalorder %s32, 1
      %s34 = scalar_select %p33, 0, %s32
      %s35 = sadd.s32 1, %s24
      %s36 = scalar_select %p33, %s35, %s24
      %p37 = scmp.ge.s32.totalorder %s36, 2
      %s38 = scalar_select %p37, 0, %s36
      %s39 = sadd.s32 1, %s23
      %s40 = scalar_select %p37, %s39, %s23
      %p41 = scmp.ge.s32.totalorder %s40, 1
      %s42 = scalar_select %p41, 0, %s40
      %s43 = ssub.s32 %s24, %s38
      %s44 = ssub.s32 %s23, %s42
      %s45 = sor.u32 %s43, %s44
      %p46 = scmp.eq.s32.totalorder %s45, 0
      %s48 = sadd.s32 %s47, 1
      %s49 = scalar_select %p46, %s47, %s48
      %p52 = pneg %p46
      %p53 = scmp.eq.s32.totalorder %s16, 1
      %p54 = por %p52, %p53
      %p55 = scmp.ne.s32.totalorder %s47, %s50
      %p56 = scmp.eq.s32.totalorder %s16, 0
      %p57 = por %p55, %p56
      %p58 = scmp.ne.s32.totalorder %s47, %s50
      %p59 = scmp.eq.s32.totalorder %s21, 1
      %p60 = por %p58, %p59
      %p61 = scmp.ne.s32.totalorder %s50, %s51
      %p62 = scmp.eq.s32.totalorder %s21, 0
      %p63 = por %p61, %p62
      %p64 = scmp.ne.s32.totalorder %s50, %s51
      %p65 = scmp.eq.s32.totalorder %s22, 1
      %p66 = por %p64, %p65
      %p68 = scmp.ne.s32.totalorder %s51, %s67
      %p69 = scmp.eq.s32.totalorder %s22, 0
      %p70 = por %p68, %p69
      %s71 = ssub.s32 %s23, %s42
      %p72 = scmp.eq.s32.totalorder %s71, 0
      %s74 = sadd.s32 %s73, 1
      %s75 = scalar_select %p72, %s73, %s74
      %p78 = pneg %p72
      %p79 = scmp.eq.s32.totalorder %s16, 1
      %p80 = por %p78, %p79
      %p81 = scmp.ne.s32.totalorder %s73, %s76
      %p82 = scmp.eq.s32.totalorder %s16, 0
      %p83 = por %p81, %p82
      %p84 = scmp.ne.s32.totalorder %s73, %s76
      %p85 = scmp.eq.s32.totalorder %s21, 1
      %p86 = por %p84, %p85
      %p87 = scmp.ne.s32.totalorder %s76, %s77
      %p88 = scmp.eq.s32.totalorder %s21, 0
      %p89 = por %p87, %p88
      %p90 = scmp.ne.s32.totalorder %s76, %s77
      %p91 = scmp.eq.s32.totalorder %s22, 1
      %p92 = por %p90, %p91
      %p94 = scmp.ne.s32.totalorder %s77, %s93
      %p95 = scmp.eq.s32.totalorder %s22, 0
      %p96 = por %p94, %p95
      %s97 = ssub.s32 %s23, %s42
      %p98 = scmp.eq.s32.totalorder %s97, 0
      %s100 = sadd.s32 %s99, 1
      %s101 = scalar_select %p98, %s99, %s100
      %p104 = pneg %p98
      %p105 = scmp.eq.s32.totalorder %s16, 1
      %p106 = por %p104, %p105
      %p107 = scmp.ne.s32.totalorder %s99, %s102
      %p108 = scmp.eq.s32.totalorder %s16, 0
      %p109 = por %p107, %p108
      %p110 = scmp.ne.s32.totalorder %s99, %s102
      %p111 = scmp.eq.s32.totalorder %s21, 1
      %p112 = por %p110, %p111
      %p113 = scmp.ne.s32.totalorder %s102, %s103
      %p114 = scmp.eq.s32.totalorder %s21, 0
      %p115 = por %p113, %p114
      %p116 = scmp.ne.s32.totalorder %s102, %s103
      %p117 = scmp.eq.s32.totalorder %s22, 1
      %p118 = por %p116, %p117
      %p120 = scmp.ne.s32.totalorder %s103, %s119
      %p121 = scmp.eq.s32.totalorder %s22, 0
      %p122 = por %p120, %p121
      %s123 = ssub.s32 %s24, %s38
      %s124 = ssub.s32 %s25, %s34
      %s125 = sor.u32 %s123, %s124
      %s126 = ssub.s32 %s23, %s42
      %s127 = sor.u32 %s125, %s126
      %p128 = scmp.eq.s32.totalorder %s127, 0
      %s130 = sadd.s32 %s129, 1
      %s131 = scalar_select %p128, %s129, %s130
      %p134 = pneg %p128
      %p135 = scmp.eq.s32.totalorder %s16, 1
      %p136 = por %p134, %p135
      %p137 = scmp.ne.s32.totalorder %s129, %s132
      %p138 = scmp.eq.s32.totalorder %s16, 0
      %p139 = por %p137, %p138
      %p140 = scmp.ne.s32.totalorder %s129, %s132
      %p141 = scmp.eq.s32.totalorder %s21, 1
      %p142 = por %p140, %p141
      %p143 = scmp.ne.s32.totalorder %s132, %s133
      %p144 = scmp.eq.s32.totalorder %s21, 0
      %p145 = por %p143, %p144
      %p146 = scmp.ne.s32.totalorder %s132, %s133
      %p147 = scmp.eq.s32.totalorder %s22, 1
      %p148 = por %p146, %p147
      %p150 = scmp.ne.s32.totalorder %s133, %s149
      %p151 = scmp.eq.s32.totalorder %s22, 0
      %p152 = por %p150, %p151
      %p153 = scmp.le.s32.totalorder 1, %s16
      %p154 = scmp.lt.s32.totalorder %s16, 3
      %p155 = pnand %p153, %p154
      %p156 = pneg %p155
      // Predicated region
      $region9: #{tpu_custom_call.1} parent=5 // pred_check
        _
      $region10: #{tpu_custom_call.1} parent=5 // pred_check_branch
        %158 = sbr.rel (%p155) target = $region12
      $region11: #{tpu_custom_call.1} parent=5 // pred_region
        %s159 = ssub.s32 %s16, 1
        // Predicated region
        $region13: #{tpu_custom_call.1} parent=11 // pred_check
          %p160 = pneg %p89
        $region14: #{tpu_custom_call.1} parent=11 // pred_check_branch
          %162 = sbr.rel (%p160) target = $region16
        $region15: #{tpu_custom_call.1} parent=11 // pred_region
          %s164 = ssub.s32 192, 192
          %165 = vsyncadd [#allocation7], %s164
          %s166 = smul.addr %s26, 64
          %s167 = scalar_lea.hbm %s1, %s166
          %s168 = sshll.u32 [#allocation6], 4
          %s169 = int_to_ptr.vmem [resolvable:$true] %s168
          %174 = dma.hbm_to_vmem [thread:$0]  %s167, 192, %s169, [#allocation7], 64, 64, 4
        $region16: #{tpu_custom_call.1} parent=11 // pred_fallthru
          _
        // Predicated region
        $region17: #{tpu_custom_call.1} parent=11 // pred_check
          %p175 = pneg %p115
        $region18: #{tpu_custom_call.1} parent=11 // pred_check_branch
          %177 = sbr.rel (%p175) target = $region20
        $region19: #{tpu_custom_call.1} parent=11 // pred_region
          %p178 = scmp.lt.s32.totalorder %s26, 0
          %s179 = scalar_select %p178, %s26, 0
          %s180 = scalar_lea.vmem %s2, %s179
        $region20: #{tpu_custom_call.1} parent=11 // pred_fallthru
          _
      $region12: #{tpu_custom_call.1} parent=5 // pred_fallthru
        _
      %p181 = scmp.lt.s32.totalorder %s16, 2
      // Predicated region
      $region21: #{tpu_custom_call.1} parent=5 // pred_check
        %p182 = pneg %p181
      $region22: #{tpu_custom_call.1} parent=5 // pred_check_branch
        %184 = sbr.rel (%p182) target = $region24
      $region23: #{tpu_custom_call.1} parent=5 // pred_region
        // Predicated region
        $region25: #{tpu_custom_call.1} parent=23 // pred_check
          %p185 = pneg %p57
        $region26: #{tpu_custom_call.1} parent=23 // pred_check_branch
          %187 = sbr.rel (%p185) target = $region28
        $region27: #{tpu_custom_call.1} parent=23 // pred_region
          %s188 = sand.u32 %s47, 1
          %s189 = scalar_lea.sflag [#allocation4], %s188
          %s190 = sand.u32 %s47, 1
          %s191 = smul.addr %s190, 480
          %s192 = scalar_lea.vmem [#allocation3], %s191
          %s194 = ssub.s32 7680, 7680
          %195 = vsyncadd %s189, %s194
          %s196 = smul.addr %s24, 60
          %s197 = sadd.s32 %s23, %s196
          %s198 = smul.addr %s197, 128
          %s199 = scalar_lea.hbm %s0, %s198
          %s200 = sshll.u32 %s192, 4
          %s201 = int_to_ptr.vmem [resolvable:$true] %s200
          %206 = dma.hbm_to_vmem [thread:$0]  %s199, 7680, %s201, %s189, 128, 128, 8
        $region28: #{tpu_custom_call.1} parent=23 // pred_fallthru
          _
      $region24: #{tpu_custom_call.1} parent=5 // pred_fallthru
        _
      %p207 = scmp.le.s32.totalorder 1, %s16
      %p208 = scmp.lt.s32.totalorder %s16, 3
      %p209 = pnand %p207, %p208
      %p210 = pneg %p209
      // Predicated region
      $region29: #{tpu_custom_call.1} parent=5 // pred_check
        _
      $region30: #{tpu_custom_call.1} parent=5 // pred_check_branch
        %212 = sbr.rel (%p209) target = $region32
      $region31: #{tpu_custom_call.1} parent=5 // pred_region
        %s213 = ssub.s32 %s16, 1
        %s214 = sand.u32 %s50, 1
        %s215 = scalar_lea.sflag [#allocation4], %s214
        %s216 = sand.u32 %s50, 1
        %s217 = smul.addr %s216, 480
        %s218 = scalar_lea.vmem [#allocation3], %s217
        // Predicated region
        $region33: #{tpu_custom_call.1} parent=31 // pred_check
          %p219 = pneg %p63
        $region34: #{tpu_custom_call.1} parent=31 // pred_check_branch
          %221 = sbr.rel (%p219) target = $region36
        $region35: #{tpu_custom_call.1} parent=31 // pred_region
          %222 = dma.done %s215, 7680
        $region36: #{tpu_custom_call.1} parent=31 // pred_fallthru
          _
        // Predicated region
        $region37: #{tpu_custom_call.1} parent=31 // pred_check
          %p223 = pneg %p89
        $region38: #{tpu_custom_call.1} parent=31 // pred_check_branch
          %225 = sbr.rel (%p223) target = $region40
        $region39: #{tpu_custom_call.1} parent=31 // pred_region
          %226 = dma.done [#allocation7], 192
        $region40: #{tpu_custom_call.1} parent=31 // pred_fallthru
          _
        %s227 = sand.u32 %s50, 1
        %s228 = scalar_lea.sflag [#allocation4], %s227
        %s229 = sand.u32 %s50, 1
        %s230 = smul.addr %s229, 480
        %s231 = scalar_lea.vmem [#allocation3], %s230
        %p232 = pneg %p63
        %p233 = pneg %p60
        %p234 = pneg %p89
        %p235 = pneg %p86
        %p236 = scmp.lt.s32.totalorder %s26, 0
        %s237 = scalar_select %p236, %s26, 0
        %s238 = scalar_lea.vmem %s2, %s237
        %p239 = pneg %p115
        %p240 = pneg %p112
        %p241 = pneg %p145
        %p242 = pneg %p142
        %s243 = sand.u32 %s132, 1
        %s244 = scalar_lea.sflag [#allocation5], %s243
        %s245 = sand.u32 %s132, 1
        %s246 = smul.addr %s245, 256
        %s247 = scalar_lea.vmem [#allocation8], %s246
        %p248 = scmp.lt.s32.totalorder %s26, 0
        %s249 = scalar_select %p248, %s26, 0
        %s250 = scalar_lea.vmem %s2, %s249
        %s251 = smul.u32 16, %s28
        %v252 = vld [vmem:[%s218 + $0x2] sm:$0xff]
        %v253 = vld [vmem:[%s218 + $0xa] sm:$0xff]
        %v254 = vld [vmem:[%s218 + $0x1a] sm:$0xff]
        %v255 = vld [vmem:[%s218 + $0x22] sm:$0xff]
        %v256 = vld [vmem:[%s218 + $0x32] sm:$0xff]
        %v257 = vld [vmem:[%s218 + $0x3a] sm:$0xff]
        %v258 = vld [vmem:[%s218 + $0x4a] sm:$0xff]
        %v259 = vld [vmem:[%s218 + $0x52] sm:$0xff]
        %v260 = vld [vmem:[%s218 + $0x62] sm:$0xff]
        %v261 = vld [vmem:[%s218 + $0x6a] sm:$0xff]
        %v262 = vld [vmem:[%s218 + $0x7a] sm:$0xff]
        %v263 = vld [vmem:[%s218 + $0x82] sm:$0xff]
        %v264 = vld [vmem:[%s218 + $0x92] sm:$0xff]
        %v265 = vld [vmem:[%s218 + $0x9a] sm:$0xff]
        %v266 = vld [vmem:[%s218 + $0xaa] sm:$0xff]
        %v267 = vld [vmem:[%s218 + $0xb2] sm:$0xff]
        %v268 = vld [vmem:[%s218 + $0xc2] sm:$0xff]
        %v269 = vld [vmem:[%s218 + $0xca] sm:$0xff]
        %v270 = vld [vmem:[%s218 + $0xda] sm:$0xff]
        %v271 = vld [vmem:[%s218 + $0xe2] sm:$0xff]
        %v272 = vld [vmem:[%s218 + $0xf2] sm:$0xff]
        %v273 = vld [vmem:[%s218 + $0xfa] sm:$0xff]
        %v274 = vld [vmem:[%s218 + $0x10a] sm:$0xff]
        %v275 = vld [vmem:[%s218 + $0x112] sm:$0xff]
        %v276 = vld [vmem:[%s218 + $0x122] sm:$0xff]
        %v277 = vld [vmem:[%s218 + $0x12a] sm:$0xff]
        %v278 = vld [vmem:[%s218 + $0x13a] sm:$0xff]
        %v279 = vld [vmem:[%s218 + $0x142] sm:$0xff]
        %v280 = vld [vmem:[%s218 + $0x152] sm:$0xff]
        %v281 = vld [vmem:[%s218 + $0x15a] sm:$0xff]
        %v282 = vld [vmem:[%s218 + $0x16a] sm:$0xff]
        %v283 = vld [vmem:[%s218 + $0x172] sm:$0xff]
        %v284 = vld [vmem:[%s218 + $0x182] sm:$0xff]
        %v285 = vld [vmem:[%s218 + $0x18a] sm:$0xff]
        %v286 = vld [vmem:[%s218 + $0x19a] sm:$0xff]
        %v287 = vld [vmem:[%s218 + $0x1a2] sm:$0xff]
        %v288 = vld [vmem:[%s218 + $0x1b2] sm:$0xff]
        %v289 = vld [vmem:[%s218 + $0x1ba] sm:$0xff]
        %v290 = vld [vmem:[%s218 + $0x1ca] sm:$0xff]
        %v291 = vld [vmem:[%s218 + $0x1d2] sm:$0xff]
        %292 = vst [vmem:[#allocation2] sm:$0xff] %v252
        %293 = vst [vmem:[#allocation2 + $0x8] sm:$0xff] %v253
        %294 = vst [vmem:[#allocation2 + $0x10] sm:$0xff] %v254
        %295 = vst [vmem:[#allocation2 + $0x18] sm:$0xff] %v255
        %296 = vst [vmem:[#allocation2 + $0x20] sm:$0xff] %v256
        %297 = vst [vmem:[#allocation2 + $0x28] sm:$0xff] %v257
        %298 = vst [vmem:[#allocation2 + $0x30] sm:$0xff] %v258
        %299 = vst [vmem:[#allocation2 + $0x38] sm:$0xff] %v259
        %300 = vst [vmem:[#allocation2 + $0x40] sm:$0xff] %v260
        %301 = vst [vmem:[#allocation2 + $0x48] sm:$0xff] %v261
        %302 = vst [vmem:[#allocation2 + $0x50] sm:$0xff] %v262
        %303 = vst [vmem:[#allocation2 + $0x58] sm:$0xff] %v263
        %304 = vst [vmem:[#allocation2 + $0x60] sm:$0xff] %v264
        %305 = vst [vmem:[#allocation2 + $0x68] sm:$0xff] %v265
        %306 = vst [vmem:[#allocation2 + $0x70] sm:$0xff] %v266
        %307 = vst [vmem:[#allocation2 + $0x78] sm:$0xff] %v267
        %308 = vst [vmem:[#allocation2 + $0x80] sm:$0xff] %v268
        %309 = vst [vmem:[#allocation2 + $0x88] sm:$0xff] %v269
        %310 = vst [vmem:[#allocation2 + $0x90] sm:$0xff] %v270
        %311 = vst [vmem:[#allocation2 + $0x98] sm:$0xff] %v271
        %312 = vst [vmem:[#allocation2 + $0xa0] sm:$0xff] %v272
        %313 = vst [vmem:[#allocation2 + $0xa8] sm:$0xff] %v273
        %314 = vst [vmem:[#allocation2 + $0xb0] sm:$0xff] %v274
        %315 = vst [vmem:[#allocation2 + $0xb8] sm:$0xff] %v275
        %316 = vst [vmem:[#allocation2 + $0xc0] sm:$0xff] %v276
        %317 = vst [vmem:[#allocation2 + $0xc8] sm:$0xff] %v277
        %318 = vst [vmem:[#allocation2 + $0xd0] sm:$0xff] %v278
        %319 = vst [vmem:[#allocation2 + $0xd8] sm:$0xff] %v279
        %320 = vst [vmem:[#allocation2 + $0xe0] sm:$0xff] %v280
        %321 = vst [vmem:[#allocation2 + $0xe8] sm:$0xff] %v281
        %322 = vst [vmem:[#allocation2 + $0xf0] sm:$0xff] %v282
        %323 = vst [vmem:[#allocation2 + $0xf8] sm:$0xff] %v283
        %324 = vst [vmem:[#allocation2 + $0x100] sm:$0xff] %v284
        %325 = vst [vmem:[#allocation2 + $0x108] sm:$0xff] %v285
        %326 = vst [vmem:[#allocation2 + $0x110] sm:$0xff] %v286
        %327 = vst [vmem:[#allocation2 + $0x118] sm:$0xff] %v287
        %328 = vst [vmem:[#allocation2 + $0x120] sm:$0xff] %v288
        %329 = vst [vmem:[#allocation2 + $0x128] sm:$0xff] %v289
        %330 = vst [vmem:[#allocation2 + $0x130] sm:$0xff] %v290
        %331 = vst [vmem:[#allocation2 + $0x138] sm:$0xff] %v291
        %v332 = vld [vmem:[%s218 + $0x4] sm:$0xff]
        %v333 = vld [vmem:[%s218 + $0xc] sm:$0xff]
        %v334 = vld [vmem:[%s218 + $0x1c] sm:$0xff]
        %v335 = vld [vmem:[%s218 + $0x24] sm:$0xff]
        %v336 = vld [vmem:[%s218 + $0x34] sm:$0xff]
        %v337 = vld [vmem:[%s218 + $0x3c] sm:$0xff]
        %v338 = vld [vmem:[%s218 + $0x4c] sm:$0xff]
        %v339 = vld [vmem:[%s218 + $0x54] sm:$0xff]
        %v340 = vld [vmem:[%s218 + $0x64] sm:$0xff]
        %v341 = vld [vmem:[%s218 + $0x6c] sm:$0xff]
        %v342 = vld [vmem:[%s218 + $0x7c] sm:$0xff]
        %v343 = vld [vmem:[%s218 + $0x84] sm:$0xff]
        %v344 = vld [vmem:[%s218 + $0x94] sm:$0xff]
        %v345 = vld [vmem:[%s218 + $0x9c] sm:$0xff]
        %v346 = vld [vmem:[%s218 + $0xac] sm:$0xff]
        %v347 = vld [vmem:[%s218 + $0xb4] sm:$0xff]
        %v348 = vld [vmem:[%s218 + $0xc4] sm:$0xff]
        %v349 = vld [vmem:[%s218 + $0xcc] sm:$0xff]
        %v350 = vld [vmem:[%s218 + $0xdc] sm:$0xff]
        %v351 = vld [vmem:[%s218 + $0xe4] sm:$0xff]
        %v352 = vld [vmem:[%s218 + $0xf4] sm:$0xff]
        %v353 = vld [vmem:[%s218 + $0xfc] sm:$0xff]
        %v354 = vld [vmem:[%s218 + $0x10c] sm:$0xff]
        %v355 = vld [vmem:[%s218 + $0x114] sm:$0xff]
        %v356 = vld [vmem:[%s218 + $0x124] sm:$0xff]
        %v357 = vld [vmem:[%s218 + $0x12c] sm:$0xff]
        %v358 = vld [vmem:[%s218 + $0x13c] sm:$0xff]
        %v359 = vld [vmem:[%s218 + $0x144] sm:$0xff]
        %v360 = vld [vmem:[%s218 + $0x154] sm:$0xff]
        %v361 = vld [vmem:[%s218 + $0x15c] sm:$0xff]
        %v362 = vld [vmem:[%s218 + $0x16c] sm:$0xff]
        %v363 = vld [vmem:[%s218 + $0x174] sm:$0xff]
        %v364 = vld [vmem:[%s218 + $0x184] sm:$0xff]
        %v365 = vld [vmem:[%s218 + $0x18c] sm:$0xff]
        %v366 = vld [vmem:[%s218 + $0x19c] sm:$0xff]
        %v367 = vld [vmem:[%s218 + $0x1a4] sm:$0xff]
        %v368 = vld [vmem:[%s218 + $0x1b4] sm:$0xff]
        %v369 = vld [vmem:[%s218 + $0x1bc] sm:$0xff]
        %v370 = vld [vmem:[%s218 + $0x1cc] sm:$0xff]
        %v371 = vld [vmem:[%s218 + $0x1d4] sm:$0xff]
        %s372 = scalar_lea.vmem [#allocation2], 320
        %373 = vst [vmem:[%s372] sm:$0xff] %v332
        %374 = vst [vmem:[%s372 + $0x8] sm:$0xff] %v333
        %375 = vst [vmem:[%s372 + $0x10] sm:$0xff] %v334
        %376 = vst [vmem:[%s372 + $0x18] sm:$0xff] %v335
        %377 = vst [vmem:[%s372 + $0x20] sm:$0xff] %v336
        %378 = vst [vmem:[%s372 + $0x28] sm:$0xff] %v337
        %379 = vst [vmem:[%s372 + $0x30] sm:$0xff] %v338
        %380 = vst [vmem:[%s372 + $0x38] sm:$0xff] %v339
        %381 = vst [vmem:[%s372 + $0x40] sm:$0xff] %v340
        %382 = vst [vmem:[%s372 + $0x48] sm:$0xff] %v341
        %383 = vst [vmem:[%s372 + $0x50] sm:$0xff] %v342
        %384 = vst [vmem:[%s372 + $0x58] sm:$0xff] %v343
        %385 = vst [vmem:[%s372 + $0x60] sm:$0xff] %v344
        %386 = vst [vmem:[%s372 + $0x68] sm:$0xff] %v345
        %387 = vst [vmem:[%s372 + $0x70] sm:$0xff] %v346
        %388 = vst [vmem:[%s372 + $0x78] sm:$0xff] %v347
        %389 = vst [vmem:[%s372 + $0x80] sm:$0xff] %v348
        %390 = vst [vmem:[%s372 + $0x88] sm:$0xff] %v349
        %391 = vst [vmem:[%s372 + $0x90] sm:$0xff] %v350
        %392 = vst [vmem:[%s372 + $0x98] sm:$0xff] %v351
        %393 = vst [vmem:[%s372 + $0xa0] sm:$0xff] %v352
        %394 = vst [vmem:[%s372 + $0xa8] sm:$0xff] %v353
        %395 = vst [vmem:[%s372 + $0xb0] sm:$0xff] %v354
        %396 = vst [vmem:[%s372 + $0xb8] sm:$0xff] %v355
        %397 = vst [vmem:[%s372 + $0xc0] sm:$0xff] %v356
        %398 = vst [vmem:[%s372 + $0xc8] sm:$0xff] %v357
        %399 = vst [vmem:[%s372 + $0xd0] sm:$0xff] %v358
        %400 = vst [vmem:[%s372 + $0xd8] sm:$0xff] %v359
        %401 = vst [vmem:[%s372 + $0xe0] sm:$0xff] %v360
        %402 = vst [vmem:[%s372 + $0xe8] sm:$0xff] %v361
        %403 = vst [vmem:[%s372 + $0xf0] sm:$0xff] %v362
        %404 = vst [vmem:[%s372 + $0xf8] sm:$0xff] %v363
        %405 = vst [vmem:[%s372 + $0x100] sm:$0xff] %v364
        %406 = vst [vmem:[%s372 + $0x108] sm:$0xff] %v365
        %407 = vst [vmem:[%s372 + $0x110] sm:$0xff] %v366
        %408 = vst [vmem:[%s372 + $0x118] sm:$0xff] %v367
        %409 = vst [vmem:[%s372 + $0x120] sm:$0xff] %v368
        %410 = vst [vmem:[%s372 + $0x128] sm:$0xff] %v369
        %411 = vst [vmem:[%s372 + $0x130] sm:$0xff] %v370
        %412 = vst [vmem:[%s372 + $0x138] sm:$0xff] %v371
        %v413 = vld [vmem:[#allocation6] sm:$0x1]
        %v414 = vld [vmem:[#allocation6 + $0x1] sm:$0x1]
        %v415 = vld [vmem:[#allocation6 + $0x2] sm:$0x1]
        %s416 = scalar_lea.vmem [#allocation6], 4
        %v417 = vld [vmem:[%s416] sm:$0x1]
        %v418 = vld [vmem:[%s416 + $0x1] sm:$0x1]
        %v419 = vld [vmem:[%s416 + $0x2] sm:$0x1]
        %s420 = scalar_lea.vmem [#allocation6], 8
        %v421 = vld [vmem:[%s420] sm:$0x1]
        %v422 = vld [vmem:[%s420 + $0x1] sm:$0x1]
        %v423 = vld [vmem:[%s420 + $0x2] sm:$0x1]
        %v424 = vld [vmem:[%s250] sm:$0x1]
        %v425 = vld [vmem:[%s218] sm:$0xff]
        %v426 = vld [vmem:[%s218 + $0x8] sm:$0xff]
        %v427 = vld [vmem:[%s218 + $0x18] sm:$0xff]
        %v428 = vld [vmem:[%s218 + $0x20] sm:$0xff]
        %v429 = vld [vmem:[%s218 + $0x30] sm:$0xff]
        %v430 = vld [vmem:[%s218 + $0x38] sm:$0xff]
        %v431 = vld [vmem:[%s218 + $0x48] sm:$0xff]
        %v432 = vld [vmem:[%s218 + $0x50] sm:$0xff]
        %v433 = vld [vmem:[%s218 + $0x60] sm:$0xff]
        %v434 = vld [vmem:[%s218 + $0x68] sm:$0xff]
        %v435 = vld [vmem:[%s218 + $0x78] sm:$0xff]
        %v436 = vld [vmem:[%s218 + $0x80] sm:$0xff]
        %v437 = vld [vmem:[%s218 + $0x90] sm:$0xff]
        %v438 = vld [vmem:[%s218 + $0x98] sm:$0xff]
        %v439 = vld [vmem:[%s218 + $0xa8] sm:$0xff]
        %v440 = vld [vmem:[%s218 + $0xb0] sm:$0xff]
        %v441 = vld [vmem:[%s218 + $0xc0] sm:$0xff]
        %v442 = vld [vmem:[%s218 + $0xc8] sm:$0xff]
        %v443 = vld [vmem:[%s218 + $0xd8] sm:$0xff]
        %v444 = vld [vmem:[%s218 + $0xe0] sm:$0xff]
        %v445 = vld [vmem:[%s218 + $0xf0] sm:$0xff]
        %v446 = vld [vmem:[%s218 + $0xf8] sm:$0xff]
        %v447 = vld [vmem:[%s218 + $0x108] sm:$0xff]
        %v448 = vld [vmem:[%s218 + $0x110] sm:$0xff]
        %v449 = vld [vmem:[%s218 + $0x120] sm:$0xff]
        %v450 = vld [vmem:[%s218 + $0x128] sm:$0xff]
        %v451 = vld [vmem:[%s218 + $0x138] sm:$0xff]
        %v452 = vld [vmem:[%s218 + $0x140] sm:$0xff]
        %v453 = vld [vmem:[%s218 + $0x150] sm:$0xff]
        %v454 = vld [vmem:[%s218 + $0x158] sm:$0xff]
        %v455 = vld [vmem:[%s218 + $0x168] sm:$0xff]
        %v456 = vld [vmem:[%s218 + $0x170] sm:$0xff]
        %v457 = vlaneseq
        %v458 = vshrl.u32 %v457, 7
        %v459 = vsub.s32 0, %v458
        %v460 = vrot.slane %v413, %v459
        %v461 = vmul.f32 %v425, %v460
        %v462 = vmul.f32 %v426, %v460
        %v463 = vmul.f32 %v427, %v460
        %v464 = vmul.f32 %v428, %v460
        %v465 = vmul.f32 %v429, %v460
        %v466 = vmul.f32 %v430, %v460
        %v467 = vmul.f32 %v431, %v460
        %v468 = vmul.f32 %v432, %v460
        %v469 = vmul.f32 %v433, %v460
        %v470 = vmul.f32 %v434, %v460
        %v471 = vmul.f32 %v435, %v460
        %v472 = vmul.f32 %v436, %v460
        %v473 = vmul.f32 %v437, %v460
        %v474 = vmul.f32 %v438, %v460
        %v475 = vmul.f32 %v439, %v460
        %v476 = vmul.f32 %v440, %v460
        %v477 = vmul.f32 %v441, %v460
        %v478 = vmul.f32 %v442, %v460
        %v479 = vmul.f32 %v443, %v460
        %v480 = vmul.f32 %v444, %v460
        %v481 = vmul.f32 %v445, %v460
        %v482 = vmul.f32 %v446, %v460
        %v483 = vmul.f32 %v447, %v460
        %v484 = vmul.f32 %v448, %v460
        %v485 = vmul.f32 %v449, %v460
        %v486 = vmul.f32 %v450, %v460
        %v487 = vmul.f32 %v451, %v460
        %v488 = vmul.f32 %v452, %v460
        %v489 = vmul.f32 %v453, %v460
        %v490 = vmul.f32 %v454, %v460
        %v491 = vmul.f32 %v455, %v460
        %v492 = vmul.f32 %v456, %v460
        %v493 = vadd.f32 %v461, 0.0
        %v494 = vadd.f32 %v462, 0.0
        %v495 = vadd.f32 %v463, 0.0
        %v496 = vadd.f32 %v464, 0.0
        %v497 = vadd.f32 %v465, 0.0
        %v498 = vadd.f32 %v466, 0.0
        %v499 = vadd.f32 %v467, 0.0
        %v500 = vadd.f32 %v468, 0.0
        %v501 = vadd.f32 %v469, 0.0
        %v502 = vadd.f32 %v470, 0.0
        %v503 = vadd.f32 %v471, 0.0
        %v504 = vadd.f32 %v472, 0.0
        %v505 = vadd.f32 %v473, 0.0
        %v506 = vadd.f32 %v474, 0.0
        %v507 = vadd.f32 %v475, 0.0
        %v508 = vadd.f32 %v476, 0.0
        %v509 = vadd.f32 %v477, 0.0
        %v510 = vadd.f32 %v478, 0.0
        %v511 = vadd.f32 %v479, 0.0
        %v512 = vadd.f32 %v480, 0.0
        %v513 = vadd.f32 %v481, 0.0
        %v514 = vadd.f32 %v482, 0.0
        %v515 = vadd.f32 %v483, 0.0
        %v516 = vadd.f32 %v484, 0.0
        %v517 = vadd.f32 %v485, 0.0
        %v518 = vadd.f32 %v486, 0.0
        %v519 = vadd.f32 %v487, 0.0
        %v520 = vadd.f32 %v488, 0.0
        %v521 = vadd.f32 %v489, 0.0
        %v522 = vadd.f32 %v490, 0.0
        %v523 = vadd.f32 %v491, 0.0
        %v524 = vadd.f32 %v492, 0.0
        %v525 = vld [vmem:[#allocation2] sm:$0xff]
        %v526 = vld [vmem:[#allocation2 + $0x8] sm:$0xff]
        %v527 = vld [vmem:[#allocation2 + $0x10] sm:$0xff]
        %v528 = vld [vmem:[#allocation2 + $0x18] sm:$0xff]
        %v529 = vld [vmem:[#allocation2 + $0x20] sm:$0xff]
        %v530 = vld [vmem:[#allocation2 + $0x28] sm:$0xff]
        %v531 = vld [vmem:[#allocation2 + $0x30] sm:$0xff]
        %v532 = vld [vmem:[#allocation2 + $0x38] sm:$0xff]
        %v533 = vld [vmem:[#allocation2 + $0x40] sm:$0xff]
        %v534 = vld [vmem:[#allocation2 + $0x48] sm:$0xff]
        %v535 = vld [vmem:[#allocation2 + $0x50] sm:$0xff]
        %v536 = vld [vmem:[#allocation2 + $0x58] sm:$0xff]
        %v537 = vld [vmem:[#allocation2 + $0x60] sm:$0xff]
        %v538 = vld [vmem:[#allocation2 + $0x68] sm:$0xff]
        %v539 = vld [vmem:[#allocation2 + $0x70] sm:$0xff]
        %v540 = vld [vmem:[#allocation2 + $0x78] sm:$0xff]
        %v541 = vld [vmem:[#allocation2 + $0x80] sm:$0xff]
        %v542 = vld [vmem:[#allocation2 + $0x88] sm:$0xff]
        %v543 = vld [vmem:[#allocation2 + $0x90] sm:$0xff]
        %v544 = vld [vmem:[#allocation2 + $0x98] sm:$0xff]
        %v545 = vld [vmem:[#allocation2 + $0xa0] sm:$0xff]
        %v546 = vld [vmem:[#allocation2 + $0xa8] sm:$0xff]
        %v547 = vld [vmem:[#allocation2 + $0xb0] sm:$0xff]
        %v548 = vld [vmem:[#allocation2 + $0xb8] sm:$0xff]
        %v549 = vld [vmem:[#allocation2 + $0xc0] sm:$0xff]
        %v550 = vld [vmem:[#allocation2 + $0xc8] sm:$0xff]
        %v551 = vld [vmem:[#allocation2 + $0xd0] sm:$0xff]
        %v552 = vld [vmem:[#allocation2 + $0xd8] sm:$0xff]
        %v553 = vld [vmem:[#allocation2 + $0xe0] sm:$0xff]
        %v554 = vld [vmem:[#allocation2 + $0xe8] sm:$0xff]
        %v555 = vld [vmem:[#allocation2 + $0xf0] sm:$0xff]
        %v556 = vld [vmem:[#allocation2 + $0xf8] sm:$0xff]
        %v557 = vlaneseq
        %v558 = vshrl.u32 %v557, 7
        %v559 = vsub.s32 0, %v558
        %v560 = vrot.slane %v414, %v559
        %v561 = vmul.f32 %v525, %v560
        %v562 = vmul.f32 %v526, %v560
        %v563 = vmul.f32 %v527, %v560
        %v564 = vmul.f32 %v528, %v560
        %v565 = vmul.f32 %v529, %v560
        %v566 = vmul.f32 %v530, %v560
        %v567 = vmul.f32 %v531, %v560
        %v568 = vmul.f32 %v532, %v560
        %v569 = vmul.f32 %v533, %v560
        %v570 = vmul.f32 %v534, %v560
        %v571 = vmul.f32 %v535, %v560
        %v572 = vmul.f32 %v536, %v560
        %v573 = vmul.f32 %v537, %v560
        %v574 = vmul.f32 %v538, %v560
        %v575 = vmul.f32 %v539, %v560
        %v576 = vmul.f32 %v540, %v560
        %v577 = vmul.f32 %v541, %v560
        %v578 = vmul.f32 %v542, %v560
        %v579 = vmul.f32 %v543, %v560
        %v580 = vmul.f32 %v544, %v560
        %v581 = vmul.f32 %v545, %v560
        %v582 = vmul.f32 %v546, %v560
        %v583 = vmul.f32 %v547, %v560
        %v584 = vmul.f32 %v548, %v560
        %v585 = vmul.f32 %v549, %v560
        %v586 = vmul.f32 %v550, %v560
        %v587 = vmul.f32 %v551, %v560
        %v588 = vmul.f32 %v552, %v560
        %v589 = vmul.f32 %v553, %v560
        %v590 = vmul.f32 %v554, %v560
        %v591 = vmul.f32 %v555, %v560
        %v592 = vmul.f32 %v556, %v560
        %v593 = vadd.f32 %v493, %v561
        %v594 = vadd.f32 %v494, %v562
        %v595 = vadd.f32 %v495, %v563
        %v596 = vadd.f32 %v496, %v564
        %v597 = vadd.f32 %v497, %v565
        %v598 = vadd.f32 %v498, %v566
        %v599 = vadd.f32 %v499, %v567
        %v600 = vadd.f32 %v500, %v568
        %v601 = vadd.f32 %v501, %v569
        %v602 = vadd.f32 %v502, %v570
        %v603 = vadd.f32 %v503, %v571
        %v604 = vadd.f32 %v504, %v572
        %v605 = vadd.f32 %v505, %v573
        %v606 = vadd.f32 %v506, %v574
        %v607 = vadd.f32 %v507, %v575
        %v608 = vadd.f32 %v508, %v576
        %v609 = vadd.f32 %v509, %v577
        %v610 = vadd.f32 %v510, %v578
        %v611 = vadd.f32 %v511, %v579
        %v612 = vadd.f32 %v512, %v580
        %v613 = vadd.f32 %v513, %v581
        %v614 = vadd.f32 %v514, %v582
        %v615 = vadd.f32 %v515, %v583
        %v616 = vadd.f32 %v516, %v584
        %v617 = vadd.f32 %v517, %v585
        %v618 = vadd.f32 %v518, %v586
        %v619 = vadd.f32 %v519, %v587
        %v620 = vadd.f32 %v520, %v588
        %v621 = vadd.f32 %v521, %v589
        %v622 = vadd.f32 %v522, %v590
        %v623 = vadd.f32 %v523, %v591
        %v624 = vadd.f32 %v524, %v592
        %v625 = vld [vmem:[%s372] sm:$0xff]
        %v626 = vld [vmem:[%s372 + $0x8] sm:$0xff]
        %v627 = vld [vmem:[%s372 + $0x10] sm:$0xff]
        %v628 = vld [vmem:[%s372 + $0x18] sm:$0xff]
        %v629 = vld [vmem:[%s372 + $0x20] sm:$0xff]
        %v630 = vld [vmem:[%s372 + $0x28] sm:$0xff]
        %v631 = vld [vmem:[%s372 + $0x30] sm:$0xff]
        %v632 = vld [vmem:[%s372 + $0x38] sm:$0xff]
        %v633 = vld [vmem:[%s372 + $0x40] sm:$0xff]
        %v634 = vld [vmem:[%s372 + $0x48] sm:$0xff]
        %v635 = vld [vmem:[%s372 + $0x50] sm:$0xff]
        %v636 = vld [vmem:[%s372 + $0x58] sm:$0xff]
        %v637 = vld [vmem:[%s372 + $0x60] sm:$0xff]
        %v638 = vld [vmem:[%s372 + $0x68] sm:$0xff]
        %v639 = vld [vmem:[%s372 + $0x70] sm:$0xff]
        %v640 = vld [vmem:[%s372 + $0x78] sm:$0xff]
        %v641 = vld [vmem:[%s372 + $0x80] sm:$0xff]
        %v642 = vld [vmem:[%s372 + $0x88] sm:$0xff]
        %v643 = vld [vmem:[%s372 + $0x90] sm:$0xff]
        %v644 = vld [vmem:[%s372 + $0x98] sm:$0xff]
        %v645 = vld [vmem:[%s372 + $0xa0] sm:$0xff]
        %v646 = vld [vmem:[%s372 + $0xa8] sm:$0xff]
        %v647 = vld [vmem:[%s372 + $0xb0] sm:$0xff]
        %v648 = vld [vmem:[%s372 + $0xb8] sm:$0xff]
        %v649 = vld [vmem:[%s372 + $0xc0] sm:$0xff]
        %v650 = vld [vmem:[%s372 + $0xc8] sm:$0xff]
        %v651 = vld [vmem:[%s372 + $0xd0] sm:$0xff]
        %v652 = vld [vmem:[%s372 + $0xd8] sm:$0xff]
        %v653 = vld [vmem:[%s372 + $0xe0] sm:$0xff]
        %v654 = vld [vmem:[%s372 + $0xe8] sm:$0xff]
        %v655 = vld [vmem:[%s372 + $0xf0] sm:$0xff]
        %v656 = vld [vmem:[%s372 + $0xf8] sm:$0xff]
        %v657 = vlaneseq
        %v658 = vshrl.u32 %v657, 7
        %v659 = vsub.s32 0, %v658
        %v660 = vrot.slane %v415, %v659
        %v661 = vmul.f32 %v625, %v660
        %v662 = vmul.f32 %v626, %v660
        %v663 = vmul.f32 %v627, %v660
        %v664 = vmul.f32 %v628, %v660
        %v665 = vmul.f32 %v629, %v660
        %v666 = vmul.f32 %v630, %v660
        %v667 = vmul.f32 %v631, %v660
        %v668 = vmul.f32 %v632, %v660
        %v669 = vmul.f32 %v633, %v660
        %v670 = vmul.f32 %v634, %v660
        %v671 = vmul.f32 %v635, %v660
        %v672 = vmul.f32 %v636, %v660
        %v673 = vmul.f32 %v637, %v660
        %v674 = vmul.f32 %v638, %v660
        %v675 = vmul.f32 %v639, %v660
        %v676 = vmul.f32 %v640, %v660
        %v677 = vmul.f32 %v641, %v660
        %v678 = vmul.f32 %v642, %v660
        %v679 = vmul.f32 %v643, %v660
        %v680 = vmul.f32 %v644, %v660
        %v681 = vmul.f32 %v645, %v660
        %v682 = vmul.f32 %v646, %v660
        %v683 = vmul.f32 %v647, %v660
        %v684 = vmul.f32 %v648, %v660
        %v685 = vmul.f32 %v649, %v660
        %v686 = vmul.f32 %v650, %v660
        %v687 = vmul.f32 %v651, %v660
        %v688 = vmul.f32 %v652, %v660
        %v689 = vmul.f32 %v653, %v660
        %v690 = vmul.f32 %v654, %v660
        %v691 = vmul.f32 %v655, %v660
        %v692 = vmul.f32 %v656, %v660
        %v693 = vadd.f32 %v593, %v661
        %v694 = vadd.f32 %v594, %v662
        %v695 = vadd.f32 %v595, %v663
        %v696 = vadd.f32 %v596, %v664
        %v697 = vadd.f32 %v597, %v665
        %v698 = vadd.f32 %v598, %v666
        %v699 = vadd.f32 %v599, %v667
        %v700 = vadd.f32 %v600, %v668
        %v701 = vadd.f32 %v601, %v669
        %v702 = vadd.f32 %v602, %v670
        %v703 = vadd.f32 %v603, %v671
        %v704 = vadd.f32 %v604, %v672
        %v705 = vadd.f32 %v605, %v673
        %v706 = vadd.f32 %v606, %v674
        %v707 = vadd.f32 %v607, %v675
        %v708 = vadd.f32 %v608, %v676
        %v709 = vadd.f32 %v609, %v677
        %v710 = vadd.f32 %v610, %v678
        %v711 = vadd.f32 %v611, %v679
        %v712 = vadd.f32 %v612, %v680
        %v713 = vadd.f32 %v613, %v681
        %v714 = vadd.f32 %v614, %v682
        %v715 = vadd.f32 %v615, %v683
        %v716 = vadd.f32 %v616, %v684
        %v717 = vadd.f32 %v617, %v685
        %v718 = vadd.f32 %v618, %v686
        %v719 = vadd.f32 %v619, %v687
        %v720 = vadd.f32 %v620, %v688
        %v721 = vadd.f32 %v621, %v689
        %v722 = vadd.f32 %v622, %v690
        %v723 = vadd.f32 %v623, %v691
        %v724 = vadd.f32 %v624, %v692
        %s725 = scalar_lea.vmem %s218, 48 [#allocation3]
        %v726 = vld [vmem:[%s725] sm:$0xff]
        %v727 = vld [vmem:[%s725 + $0x8] sm:$0xff]
        %v728 = vld [vmem:[%s725 + $0x18] sm:$0xff]
        %v729 = vld [vmem:[%s725 + $0x20] sm:$0xff]
        %v730 = vld [vmem:[%s725 + $0x30] sm:$0xff]
        %v731 = vld [vmem:[%s725 + $0x38] sm:$0xff]
        %v732 = vld [vmem:[%s725 + $0x48] sm:$0xff]
        %v733 = vld [vmem:[%s725 + $0x50] sm:$0xff]
        %v734 = vld [vmem:[%s725 + $0x60] sm:$0xff]
        %v735 = vld [vmem:[%s725 + $0x68] sm:$0xff]
        %v736 = vld [vmem:[%s725 + $0x78] sm:$0xff]
        %v737 = vld [vmem:[%s725 + $0x80] sm:$0xff]
        %v738 = vld [vmem:[%s725 + $0x90] sm:$0xff]
        %v739 = vld [vmem:[%s725 + $0x98] sm:$0xff]
        %v740 = vld [vmem:[%s725 + $0xa8] sm:$0xff]
        %v741 = vld [vmem:[%s725 + $0xb0] sm:$0xff]
        %v742 = vld [vmem:[%s725 + $0xc0] sm:$0xff]
        %v743 = vld [vmem:[%s725 + $0xc8] sm:$0xff]
        %v744 = vld [vmem:[%s725 + $0xd8] sm:$0xff]
        %v745 = vld [vmem:[%s725 + $0xe0] sm:$0xff]
        %v746 = vld [vmem:[%s725 + $0xf0] sm:$0xff]
        %v747 = vld [vmem:[%s725 + $0xf8] sm:$0xff]
        %v748 = vld [vmem:[%s725 + $0x108] sm:$0xff]
        %v749 = vld [vmem:[%s725 + $0x110] sm:$0xff]
        %v750 = vld [vmem:[%s725 + $0x120] sm:$0xff]
        %v751 = vld [vmem:[%s725 + $0x128] sm:$0xff]
        %v752 = vld [vmem:[%s725 + $0x138] sm:$0xff]
        %v753 = vld [vmem:[%s725 + $0x140] sm:$0xff]
        %v754 = vld [vmem:[%s725 + $0x150] sm:$0xff]
        %v755 = vld [vmem:[%s725 + $0x158] sm:$0xff]
        %v756 = vld [vmem:[%s725 + $0x168] sm:$0xff]
        %v757 = vld [vmem:[%s725 + $0x170] sm:$0xff]
        %v758 = vlaneseq
        %v759 = vshrl.u32 %v758, 7
        %v760 = vsub.s32 0, %v759
        %v761 = vrot.slane %v417, %v760
        %v762 = vmul.f32 %v726, %v761
        %v763 = vmul.f32 %v727, %v761
        %v764 = vmul.f32 %v728, %v761
        %v765 = vmul.f32 %v729, %v761
        %v766 = vmul.f32 %v730, %v761
        %v767 = vmul.f32 %v731, %v761
        %v768 = vmul.f32 %v732, %v761
        %v769 = vmul.f32 %v733, %v761
        %v770 = vmul.f32 %v734, %v761
        %v771 = vmul.f32 %v735, %v761
        %v772 = vmul.f32 %v736, %v761
        %v773 = vmul.f32 %v737, %v761
        %v774 = vmul.f32 %v738, %v761
        %v775 = vmul.f32 %v739, %v761
        %v776 = vmul.f32 %v740, %v761
        %v777 = vmul.f32 %v741, %v761
        %v778 = vmul.f32 %v742, %v761
        %v779 = vmul.f32 %v743, %v761
        %v780 = vmul.f32 %v744, %v761
        %v781 = vmul.f32 %v745, %v761
        %v782 = vmul.f32 %v746, %v761
        %v783 = vmul.f32 %v747, %v761
        %v784 = vmul.f32 %v748, %v761
        %v785 = vmul.f32 %v749, %v761
        %v786 = vmul.f32 %v750, %v761
        %v787 = vmul.f32 %v751, %v761
        %v788 = vmul.f32 %v752, %v761
        %v789 = vmul.f32 %v753, %v761
        %v790 = vmul.f32 %v754, %v761
        %v791 = vmul.f32 %v755, %v761
        %v792 = vmul.f32 %v756, %v761
        %v793 = vmul.f32 %v757, %v761
        %v794 = vadd.f32 %v693, %v762
        %v795 = vadd.f32 %v694, %v763
        %v796 = vadd.f32 %v695, %v764
        %v797 = vadd.f32 %v696, %v765
        %v798 = vadd.f32 %v697, %v766
        %v799 = vadd.f32 %v698, %v767
        %v800 = vadd.f32 %v699, %v768
        %v801 = vadd.f32 %v700, %v769
        %v802 = vadd.f32 %v701, %v770
        %v803 = vadd.f32 %v702, %v771
        %v804 = vadd.f32 %v703, %v772
        %v805 = vadd.f32 %v704, %v773
        %v806 = vadd.f32 %v705, %v774
        %v807 = vadd.f32 %v706, %v775
        %v808 = vadd.f32 %v707, %v776
        %v809 = vadd.f32 %v708, %v777
        %v810 = vadd.f32 %v709, %v778
        %v811 = vadd.f32 %v710, %v779
        %v812 = vadd.f32 %v711, %v780
        %v813 = vadd.f32 %v712, %v781
        %v814 = vadd.f32 %v713, %v782
        %v815 = vadd.f32 %v714, %v783
        %v816 = vadd.f32 %v715, %v784
        %v817 = vadd.f32 %v716, %v785
        %v818 = vadd.f32 %v717, %v786
        %v819 = vadd.f32 %v718, %v787
        %v820 = vadd.f32 %v719, %v788
        %v821 = vadd.f32 %v720, %v789
        %v822 = vadd.f32 %v721, %v790
        %v823 = vadd.f32 %v722, %v791
        %v824 = vadd.f32 %v723, %v792
        %v825 = vadd.f32 %v724, %v793
        %s826 = scalar_lea.vmem [#allocation2], 32
        %v827 = vld [vmem:[%s826] sm:$0xff]
        %v828 = vld [vmem:[%s826 + $0x8] sm:$0xff]
        %v829 = vld [vmem:[%s826 + $0x10] sm:$0xff]
        %v830 = vld [vmem:[%s826 + $0x18] sm:$0xff]
        %v831 = vld [vmem:[%s826 + $0x20] sm:$0xff]
        %v832 = vld [vmem:[%s826 + $0x28] sm:$0xff]
        %v833 = vld [vmem:[%s826 + $0x30] sm:$0xff]
        %v834 = vld [vmem:[%s826 + $0x38] sm:$0xff]
        %v835 = vld [vmem:[%s826 + $0x40] sm:$0xff]
        %v836 = vld [vmem:[%s826 + $0x48] sm:$0xff]
        %v837 = vld [vmem:[%s826 + $0x50] sm:$0xff]
        %v838 = vld [vmem:[%s826 + $0x58] sm:$0xff]
        %v839 = vld [vmem:[%s826 + $0x60] sm:$0xff]
        %v840 = vld [vmem:[%s826 + $0x68] sm:$0xff]
        %v841 = vld [vmem:[%s826 + $0x70] sm:$0xff]
        %v842 = vld [vmem:[%s826 + $0x78] sm:$0xff]
        %v843 = vld [vmem:[%s826 + $0x80] sm:$0xff]
        %v844 = vld [vmem:[%s826 + $0x88] sm:$0xff]
        %v845 = vld [vmem:[%s826 + $0x90] sm:$0xff]
        %v846 = vld [vmem:[%s826 + $0x98] sm:$0xff]
        %v847 = vld [vmem:[%s826 + $0xa0] sm:$0xff]
        %v848 = vld [vmem:[%s826 + $0xa8] sm:$0xff]
        %v849 = vld [vmem:[%s826 + $0xb0] sm:$0xff]
        %v850 = vld [vmem:[%s826 + $0xb8] sm:$0xff]
        %v851 = vld [vmem:[%s826 + $0xc0] sm:$0xff]
        %v852 = vld [vmem:[%s826 + $0xc8] sm:$0xff]
        %v853 = vld [vmem:[%s826 + $0xd0] sm:$0xff]
        %v854 = vld [vmem:[%s826 + $0xd8] sm:$0xff]
        %v855 = vld [vmem:[%s826 + $0xe0] sm:$0xff]
        %v856 = vld [vmem:[%s826 + $0xe8] sm:$0xff]
        %v857 = vld [vmem:[%s826 + $0xf0] sm:$0xff]
        %v858 = vld [vmem:[%s826 + $0xf8] sm:$0xff]
        %v859 = vlaneseq
        %v860 = vshrl.u32 %v859, 7
        %v861 = vsub.s32 0, %v860
        %v862 = vrot.slane %v418, %v861
        %v863 = vmul.f32 %v827, %v862
        %v864 = vmul.f32 %v828, %v862
        %v865 = vmul.f32 %v829, %v862
        %v866 = vmul.f32 %v830, %v862
        %v867 = vmul.f32 %v831, %v862
        %v868 = vmul.f32 %v832, %v862
        %v869 = vmul.f32 %v833, %v862
        %v870 = vmul.f32 %v834, %v862
        %v871 = vmul.f32 %v835, %v862
        %v872 = vmul.f32 %v836, %v862
        %v873 = vmul.f32 %v837, %v862
        %v874 = vmul.f32 %v838, %v862
        %v875 = vmul.f32 %v839, %v862
        %v876 = vmul.f32 %v840, %v862
        %v877 = vmul.f32 %v841, %v862
        %v878 = vmul.f32 %v842, %v862
        %v879 = vmul.f32 %v843, %v862
        %v880 = vmul.f32 %v844, %v862
        %v881 = vmul.f32 %v845, %v862
        %v882 = vmul.f32 %v846, %v862
        %v883 = vmul.f32 %v847, %v862
        %v884 = vmul.f32 %v848, %v862
        %v885 = vmul.f32 %v849, %v862
        %v886 = vmul.f32 %v850, %v862
        %v887 = vmul.f32 %v851, %v862
        %v888 = vmul.f32 %v852, %v862
        %v889 = vmul.f32 %v853, %v862
        %v890 = vmul.f32 %v854, %v862
        %v891 = vmul.f32 %v855, %v862
        %v892 = vmul.f32 %v856, %v862
        %v893 = vmul.f32 %v857, %v862
        %v894 = vmul.f32 %v858, %v862
        %v895 = vadd.f32 %v794, %v863
        %v896 = vadd.f32 %v795, %v864
        %v897 = vadd.f32 %v796, %v865
        %v898 = vadd.f32 %v797, %v866
        %v899 = vadd.f32 %v798, %v867
        %v900 = vadd.f32 %v799, %v868
        %v901 = vadd.f32 %v800, %v869
        %v902 = vadd.f32 %v801, %v870
        %v903 = vadd.f32 %v802, %v871
        %v904 = vadd.f32 %v803, %v872
        %v905 = vadd.f32 %v804, %v873
        %v906 = vadd.f32 %v805, %v874
        %v907 = vadd.f32 %v806, %v875
        %v908 = vadd.f32 %v807, %v876
        %v909 = vadd.f32 %v808, %v877
        %v910 = vadd.f32 %v809, %v878
        %v911 = vadd.f32 %v810, %v879
        %v912 = vadd.f32 %v811, %v880
        %v913 = vadd.f32 %v812, %v881
        %v914 = vadd.f32 %v813, %v882
        %v915 = vadd.f32 %v814, %v883
        %v916 = vadd.f32 %v815, %v884
        %v917 = vadd.f32 %v816, %v885
        %v918 = vadd.f32 %v817, %v886
        %v919 = vadd.f32 %v818, %v887
        %v920 = vadd.f32 %v819, %v888
        %v921 = vadd.f32 %v820, %v889
        %v922 = vadd.f32 %v821, %v890
        %v923 = vadd.f32 %v822, %v891
        %v924 = vadd.f32 %v823, %v892
        %v925 = vadd.f32 %v824, %v893
        %v926 = vadd.f32 %v825, %v894
        %s927 = scalar_lea.vmem [#allocation2], 352
        %v928 = vld [vmem:[%s927] sm:$0xff]
        %v929 = vld [vmem:[%s927 + $0x8] sm:$0xff]
        %v930 = vld [vmem:[%s927 + $0x10] sm:$0xff]
        %v931 = vld [vmem:[%s927 + $0x18] sm:$0xff]
        %v932 = vld [vmem:[%s927 + $0x20] sm:$0xff]
        %v933 = vld [vmem:[%s927 + $0x28] sm:$0xff]
        %v934 = vld [vmem:[%s927 + $0x30] sm:$0xff]
        %v935 = vld [vmem:[%s927 + $0x38] sm:$0xff]
        %v936 = vld [vmem:[%s927 + $0x40] sm:$0xff]
        %v937 = vld [vmem:[%s927 + $0x48] sm:$0xff]
        %v938 = vld [vmem:[%s927 + $0x50] sm:$0xff]
        %v939 = vld [vmem:[%s927 + $0x58] sm:$0xff]
        %v940 = vld [vmem:[%s927 + $0x60] sm:$0xff]
        %v941 = vld [vmem:[%s927 + $0x68] sm:$0xff]
        %v942 = vld [vmem:[%s927 + $0x70] sm:$0xff]
        %v943 = vld [vmem:[%s927 + $0x78] sm:$0xff]
        %v944 = vld [vmem:[%s927 + $0x80] sm:$0xff]
        %v945 = vld [vmem:[%s927 + $0x88] sm:$0xff]
        %v946 = vld [vmem:[%s927 + $0x90] sm:$0xff]
        %v947 = vld [vmem:[%s927 + $0x98] sm:$0xff]
        %v948 = vld [vmem:[%s927 + $0xa0] sm:$0xff]
        %v949 = vld [vmem:[%s927 + $0xa8] sm:$0xff]
        %v950 = vld [vmem:[%s927 + $0xb0] sm:$0xff]
        %v951 = vld [vmem:[%s927 + $0xb8] sm:$0xff]
        %v952 = vld [vmem:[%s927 + $0xc0] sm:$0xff]
        %v953 = vld [vmem:[%s927 + $0xc8] sm:$0xff]
        %v954 = vld [vmem:[%s927 + $0xd0] sm:$0xff]
        %v955 = vld [vmem:[%s927 + $0xd8] sm:$0xff]
        %v956 = vld [vmem:[%s927 + $0xe0] sm:$0xff]
        %v957 = vld [vmem:[%s927 + $0xe8] sm:$0xff]
        %v958 = vld [vmem:[%s927 + $0xf0] sm:$0xff]
        %v959 = vld [vmem:[%s927 + $0xf8] sm:$0xff]
        %v960 = vlaneseq
        %v961 = vshrl.u32 %v960, 7
        %v962 = vsub.s32 0, %v961
        %v963 = vrot.slane %v419, %v962
        %v964 = vmul.f32 %v928, %v963
        %v965 = vmul.f32 %v929, %v963
        %v966 = vmul.f32 %v930, %v963
        %v967 = vmul.f32 %v931, %v963
        %v968 = vmul.f32 %v932, %v963
        %v969 = vmul.f32 %v933, %v963
        %v970 = vmul.f32 %v934, %v963
        %v971 = vmul.f32 %v935, %v963
        %v972 = vmul.f32 %v936, %v963
        %v973 = vmul.f32 %v937, %v963
        %v974 = vmul.f32 %v938, %v963
        %v975 = vmul.f32 %v939, %v963
        %v976 = vmul.f32 %v940, %v963
        %v977 = vmul.f32 %v941, %v963
        %v978 = vmul.f32 %v942, %v963
        %v979 = vmul.f32 %v943, %v963
        %v980 = vmul.f32 %v944, %v963
        %v981 = vmul.f32 %v945, %v963
        %v982 = vmul.f32 %v946, %v963
        %v983 = vmul.f32 %v947, %v963
        %v984 = vmul.f32 %v948, %v963
        %v985 = vmul.f32 %v949, %v963
        %v986 = vmul.f32 %v950, %v963
        %v987 = vmul.f32 %v951, %v963
        %v988 = vmul.f32 %v952, %v963
        %v989 = vmul.f32 %v953, %v963
        %v990 = vmul.f32 %v954, %v963
        %v991 = vmul.f32 %v955, %v963
        %v992 = vmul.f32 %v956, %v963
        %v993 = vmul.f32 %v957, %v963
        %v994 = vmul.f32 %v958, %v963
        %v995 = vmul.f32 %v959, %v963
        %v996 = vadd.f32 %v895, %v964
        %v997 = vadd.f32 %v896, %v965
        %v998 = vadd.f32 %v897, %v966
        %v999 = vadd.f32 %v898, %v967
        %v1000 = vadd.f32 %v899, %v968
        %v1001 = vadd.f32 %v900, %v969
        %v1002 = vadd.f32 %v901, %v970
        %v1003 = vadd.f32 %v902, %v971
        %v1004 = vadd.f32 %v903, %v972
        %v1005 = vadd.f32 %v904, %v973
        %v1006 = vadd.f32 %v905, %v974
        %v1007 = vadd.f32 %v906, %v975
        %v1008 = vadd.f32 %v907, %v976
        %v1009 = vadd.f32 %v908, %v977
        %v1010 = vadd.f32 %v909, %v978
        %v1011 = vadd.f32 %v910, %v979
        %v1012 = vadd.f32 %v911, %v980
        %v1013 = vadd.f32 %v912, %v981
        %v1014 = vadd.f32 %v913, %v982
        %v1015 = vadd.f32 %v914, %v983
        %v1016 = vadd.f32 %v915, %v984
        %v1017 = vadd.f32 %v916, %v985
        %v1018 = vadd.f32 %v917, %v986
        %v1019 = vadd.f32 %v918, %v987
        %v1020 = vadd.f32 %v919, %v988
        %v1021 = vadd.f32 %v920, %v989
        %v1022 = vadd.f32 %v921, %v990
        %v1023 = vadd.f32 %v922, %v991
        %v1024 = vadd.f32 %v923, %v992
        %v1025 = vadd.f32 %v924, %v993
        %v1026 = vadd.f32 %v925, %v994
        %v1027 = vadd.f32 %v926, %v995
        %s1028 = scalar_lea.vmem %s218, 96 [#allocation3]
        %v1029 = vld [vmem:[%s1028] sm:$0xff]
        %v1030 = vld [vmem:[%s1028 + $0x8] sm:$0xff]
        %v1031 = vld [vmem:[%s1028 + $0x18] sm:$0xff]
        %v1032 = vld [vmem:[%s1028 + $0x20] sm:$0xff]
        %v1033 = vld [vmem:[%s1028 + $0x30] sm:$0xff]
        %v1034 = vld [vmem:[%s1028 + $0x38] sm:$0xff]
        %v1035 = vld [vmem:[%s1028 + $0x48] sm:$0xff]
        %v1036 = vld [vmem:[%s1028 + $0x50] sm:$0xff]
        %v1037 = vld [vmem:[%s1028 + $0x60] sm:$0xff]
        %v1038 = vld [vmem:[%s1028 + $0x68] sm:$0xff]
        %v1039 = vld [vmem:[%s1028 + $0x78] sm:$0xff]
        %v1040 = vld [vmem:[%s1028 + $0x80] sm:$0xff]
        %v1041 = vld [vmem:[%s1028 + $0x90] sm:$0xff]
        %v1042 = vld [vmem:[%s1028 + $0x98] sm:$0xff]
        %v1043 = vld [vmem:[%s1028 + $0xa8] sm:$0xff]
        %v1044 = vld [vmem:[%s1028 + $0xb0] sm:$0xff]
        %v1045 = vld [vmem:[%s1028 + $0xc0] sm:$0xff]
        %v1046 = vld [vmem:[%s1028 + $0xc8] sm:$0xff]
        %v1047 = vld [vmem:[%s1028 + $0xd8] sm:$0xff]
        %v1048 = vld [vmem:[%s1028 + $0xe0] sm:$0xff]
        %v1049 = vld [vmem:[%s1028 + $0xf0] sm:$0xff]
        %v1050 = vld [vmem:[%s1028 + $0xf8] sm:$0xff]
        %v1051 = vld [vmem:[%s1028 + $0x108] sm:$0xff]
        %v1052 = vld [vmem:[%s1028 + $0x110] sm:$0xff]
        %v1053 = vld [vmem:[%s1028 + $0x120] sm:$0xff]
        %v1054 = vld [vmem:[%s1028 + $0x128] sm:$0xff]
        %v1055 = vld [vmem:[%s1028 + $0x138] sm:$0xff]
        %v1056 = vld [vmem:[%s1028 + $0x140] sm:$0xff]
        %v1057 = vld [vmem:[%s1028 + $0x150] sm:$0xff]
        %v1058 = vld [vmem:[%s1028 + $0x158] sm:$0xff]
        %v1059 = vld [vmem:[%s1028 + $0x168] sm:$0xff]
        %v1060 = vld [vmem:[%s1028 + $0x170] sm:$0xff]
        %v1061 = vlaneseq
        %v1062 = vshrl.u32 %v1061, 7
        %v1063 = vsub.s32 0, %v1062
        %v1064 = vrot.slane %v421, %v1063
        %v1065 = vmul.f32 %v1029, %v1064
        %v1066 = vmul.f32 %v1030, %v1064
        %v1067 = vmul.f32 %v1031, %v1064
        %v1068 = vmul.f32 %v1032, %v1064
        %v1069 = vmul.f32 %v1033, %v1064
        %v1070 = vmul.f32 %v1034, %v1064
        %v1071 = vmul.f32 %v1035, %v1064
        %v1072 = vmul.f32 %v1036, %v1064
        %v1073 = vmul.f32 %v1037, %v1064
        %v1074 = vmul.f32 %v1038, %v1064
        %v1075 = vmul.f32 %v1039, %v1064
        %v1076 = vmul.f32 %v1040, %v1064
        %v1077 = vmul.f32 %v1041, %v1064
        %v1078 = vmul.f32 %v1042, %v1064
        %v1079 = vmul.f32 %v1043, %v1064
        %v1080 = vmul.f32 %v1044, %v1064
        %v1081 = vmul.f32 %v1045, %v1064
        %v1082 = vmul.f32 %v1046, %v1064
        %v1083 = vmul.f32 %v1047, %v1064
        %v1084 = vmul.f32 %v1048, %v1064
        %v1085 = vmul.f32 %v1049, %v1064
        %v1086 = vmul.f32 %v1050, %v1064
        %v1087 = vmul.f32 %v1051, %v1064
        %v1088 = vmul.f32 %v1052, %v1064
        %v1089 = vmul.f32 %v1053, %v1064
        %v1090 = vmul.f32 %v1054, %v1064
        %v1091 = vmul.f32 %v1055, %v1064
        %v1092 = vmul.f32 %v1056, %v1064
        %v1093 = vmul.f32 %v1057, %v1064
        %v1094 = vmul.f32 %v1058, %v1064
        %v1095 = vmul.f32 %v1059, %v1064
        %v1096 = vmul.f32 %v1060, %v1064
        %v1097 = vadd.f32 %v996, %v1065
        %v1098 = vadd.f32 %v997, %v1066
        %v1099 = vadd.f32 %v998, %v1067
        %v1100 = vadd.f32 %v999, %v1068
        %v1101 = vadd.f32 %v1000, %v1069
        %v1102 = vadd.f32 %v1001, %v1070
        %v1103 = vadd.f32 %v1002, %v1071
        %v1104 = vadd.f32 %v1003, %v1072
        %v1105 = vadd.f32 %v1004, %v1073
        %v1106 = vadd.f32 %v1005, %v1074
        %v1107 = vadd.f32 %v1006, %v1075
        %v1108 = vadd.f32 %v1007, %v1076
        %v1109 = vadd.f32 %v1008, %v1077
        %v1110 = vadd.f32 %v1009, %v1078
        %v1111 = vadd.f32 %v1010, %v1079
        %v1112 = vadd.f32 %v1011, %v1080
        %v1113 = vadd.f32 %v1012, %v1081
        %v1114 = vadd.f32 %v1013, %v1082
        %v1115 = vadd.f32 %v1014, %v1083
        %v1116 = vadd.f32 %v1015, %v1084
        %v1117 = vadd.f32 %v1016, %v1085
        %v1118 = vadd.f32 %v1017, %v1086
        %v1119 = vadd.f32 %v1018, %v1087
        %v1120 = vadd.f32 %v1019, %v1088
        %v1121 = vadd.f32 %v1020, %v1089
        %v1122 = vadd.f32 %v1021, %v1090
        %v1123 = vadd.f32 %v1022, %v1091
        %v1124 = vadd.f32 %v1023, %v1092
        %v1125 = vadd.f32 %v1024, %v1093
        %v1126 = vadd.f32 %v1025, %v1094
        %v1127 = vadd.f32 %v1026, %v1095
        %v1128 = vadd.f32 %v1027, %v1096
        %s1129 = scalar_lea.vmem [#allocation2], 64
        %v1130 = vld [vmem:[%s1129] sm:$0xff]
        %v1131 = vld [vmem:[%s1129 + $0x8] sm:$0xff]
        %v1132 = vld [vmem:[%s1129 + $0x10] sm:$0xff]
        %v1133 = vld [vmem:[%s1129 + $0x18] sm:$0xff]
        %v1134 = vld [vmem:[%s1129 + $0x20] sm:$0xff]
        %v1135 = vld [vmem:[%s1129 + $0x28] sm:$0xff]
        %v1136 = vld [vmem:[%s1129 + $0x30] sm:$0xff]
        %v1137 = vld [vmem:[%s1129 + $0x38] sm:$0xff]
        %v1138 = vld [vmem:[%s1129 + $0x40] sm:$0xff]
        %v1139 = vld [vmem:[%s1129 + $0x48] sm:$0xff]
        %v1140 = vld [vmem:[%s1129 + $0x50] sm:$0xff]
        %v1141 = vld [vmem:[%s1129 + $0x58] sm:$0xff]
        %v1142 = vld [vmem:[%s1129 + $0x60] sm:$0xff]
        %v1143 = vld [vmem:[%s1129 + $0x68] sm:$0xff]
        %v1144 = vld [vmem:[%s1129 + $0x70] sm:$0xff]
        %v1145 = vld [vmem:[%s1129 + $0x78] sm:$0xff]
        %v1146 = vld [vmem:[%s1129 + $0x80] sm:$0xff]
        %v1147 = vld [vmem:[%s1129 + $0x88] sm:$0xff]
        %v1148 = vld [vmem:[%s1129 + $0x90] sm:$0xff]
        %v1149 = vld [vmem:[%s1129 + $0x98] sm:$0xff]
        %v1150 = vld [vmem:[%s1129 + $0xa0] sm:$0xff]
        %v1151 = vld [vmem:[%s1129 + $0xa8] sm:$0xff]
        %v1152 = vld [vmem:[%s1129 + $0xb0] sm:$0xff]
        %v1153 = vld [vmem:[%s1129 + $0xb8] sm:$0xff]
        %v1154 = vld [vmem:[%s1129 + $0xc0] sm:$0xff]
        %v1155 = vld [vmem:[%s1129 + $0xc8] sm:$0xff]
        %v1156 = vld [vmem:[%s1129 + $0xd0] sm:$0xff]
        %v1157 = vld [vmem:[%s1129 + $0xd8] sm:$0xff]
        %v1158 = vld [vmem:[%s1129 + $0xe0] sm:$0xff]
        %v1159 = vld [vmem:[%s1129 + $0xe8] sm:$0xff]
        %v1160 = vld [vmem:[%s1129 + $0xf0] sm:$0xff]
        %v1161 = vld [vmem:[%s1129 + $0xf8] sm:$0xff]
        %v1162 = vlaneseq
        %v1163 = vshrl.u32 %v1162, 7
        %v1164 = vsub.s32 0, %v1163
        %v1165 = vrot.slane %v422, %v1164
        %v1166 = vmul.f32 %v1130, %v1165
        %v1167 = vmul.f32 %v1131, %v1165
        %v1168 = vmul.f32 %v1132, %v1165
        %v1169 = vmul.f32 %v1133, %v1165
        %v1170 = vmul.f32 %v1134, %v1165
        %v1171 = vmul.f32 %v1135, %v1165
        %v1172 = vmul.f32 %v1136, %v1165
        %v1173 = vmul.f32 %v1137, %v1165
        %v1174 = vmul.f32 %v1138, %v1165
        %v1175 = vmul.f32 %v1139, %v1165
        %v1176 = vmul.f32 %v1140, %v1165
        %v1177 = vmul.f32 %v1141, %v1165
        %v1178 = vmul.f32 %v1142, %v1165
        %v1179 = vmul.f32 %v1143, %v1165
        %v1180 = vmul.f32 %v1144, %v1165
        %v1181 = vmul.f32 %v1145, %v1165
        %v1182 = vmul.f32 %v1146, %v1165
        %v1183 = vmul.f32 %v1147, %v1165
        %v1184 = vmul.f32 %v1148, %v1165
        %v1185 = vmul.f32 %v1149, %v1165
        %v1186 = vmul.f32 %v1150, %v1165
        %v1187 = vmul.f32 %v1151, %v1165
        %v1188 = vmul.f32 %v1152, %v1165
        %v1189 = vmul.f32 %v1153, %v1165
        %v1190 = vmul.f32 %v1154, %v1165
        %v1191 = vmul.f32 %v1155, %v1165
        %v1192 = vmul.f32 %v1156, %v1165
        %v1193 = vmul.f32 %v1157, %v1165
        %v1194 = vmul.f32 %v1158, %v1165
        %v1195 = vmul.f32 %v1159, %v1165
        %v1196 = vmul.f32 %v1160, %v1165
        %v1197 = vmul.f32 %v1161, %v1165
        %v1198 = vadd.f32 %v1097, %v1166
        %v1199 = vadd.f32 %v1098, %v1167
        %v1200 = vadd.f32 %v1099, %v1168
        %v1201 = vadd.f32 %v1100, %v1169
        %v1202 = vadd.f32 %v1101, %v1170
        %v1203 = vadd.f32 %v1102, %v1171
        %v1204 = vadd.f32 %v1103, %v1172
        %v1205 = vadd.f32 %v1104, %v1173
        %v1206 = vadd.f32 %v1105, %v1174
        %v1207 = vadd.f32 %v1106, %v1175
        %v1208 = vadd.f32 %v1107, %v1176
        %v1209 = vadd.f32 %v1108, %v1177
        %v1210 = vadd.f32 %v1109, %v1178
        %v1211 = vadd.f32 %v1110, %v1179
        %v1212 = vadd.f32 %v1111, %v1180
        %v1213 = vadd.f32 %v1112, %v1181
        %v1214 = vadd.f32 %v1113, %v1182
        %v1215 = vadd.f32 %v1114, %v1183
        %v1216 = vadd.f32 %v1115, %v1184
        %v1217 = vadd.f32 %v1116, %v1185
        %v1218 = vadd.f32 %v1117, %v1186
        %v1219 = vadd.f32 %v1118, %v1187
        %v1220 = vadd.f32 %v1119, %v1188
        %v1221 = vadd.f32 %v1120, %v1189
        %v1222 = vadd.f32 %v1121, %v1190
        %v1223 = vadd.f32 %v1122, %v1191
        %v1224 = vadd.f32 %v1123, %v1192
        %v1225 = vadd.f32 %v1124, %v1193
        %v1226 = vadd.f32 %v1125, %v1194
        %v1227 = vadd.f32 %v1126, %v1195
        %v1228 = vadd.f32 %v1127, %v1196
        %v1229 = vadd.f32 %v1128, %v1197
        %s1230 = scalar_lea.vmem [#allocation2], 384
        %v1231 = vld [vmem:[%s1230] sm:$0xff]
        %v1232 = vld [vmem:[%s1230 + $0x8] sm:$0xff]
        %v1233 = vld [vmem:[%s1230 + $0x10] sm:$0xff]
        %v1234 = vld [vmem:[%s1230 + $0x18] sm:$0xff]
        %v1235 = vld [vmem:[%s1230 + $0x20] sm:$0xff]
        %v1236 = vld [vmem:[%s1230 + $0x28] sm:$0xff]
        %v1237 = vld [vmem:[%s1230 + $0x30] sm:$0xff]
        %v1238 = vld [vmem:[%s1230 + $0x38] sm:$0xff]
        %v1239 = vld [vmem:[%s1230 + $0x40] sm:$0xff]
        %v1240 = vld [vmem:[%s1230 + $0x48] sm:$0xff]
        %v1241 = vld [vmem:[%s1230 + $0x50] sm:$0xff]
        %v1242 = vld [vmem:[%s1230 + $0x58] sm:$0xff]
        %v1243 = vld [vmem:[%s1230 + $0x60] sm:$0xff]
        %v1244 = vld [vmem:[%s1230 + $0x68] sm:$0xff]
        %v1245 = vld [vmem:[%s1230 + $0x70] sm:$0xff]
        %v1246 = vld [vmem:[%s1230 + $0x78] sm:$0xff]
        %v1247 = vld [vmem:[%s1230 + $0x80] sm:$0xff]
        %v1248 = vld [vmem:[%s1230 + $0x88] sm:$0xff]
        %v1249 = vld [vmem:[%s1230 + $0x90] sm:$0xff]
        %v1250 = vld [vmem:[%s1230 + $0x98] sm:$0xff]
        %v1251 = vld [vmem:[%s1230 + $0xa0] sm:$0xff]
        %v1252 = vld [vmem:[%s1230 + $0xa8] sm:$0xff]
        %v1253 = vld [vmem:[%s1230 + $0xb0] sm:$0xff]
        %v1254 = vld [vmem:[%s1230 + $0xb8] sm:$0xff]
        %v1255 = vld [vmem:[%s1230 + $0xc0] sm:$0xff]
        %v1256 = vld [vmem:[%s1230 + $0xc8] sm:$0xff]
        %v1257 = vld [vmem:[%s1230 + $0xd0] sm:$0xff]
        %v1258 = vld [vmem:[%s1230 + $0xd8] sm:$0xff]
        %v1259 = vld [vmem:[%s1230 + $0xe0] sm:$0xff]
        %v1260 = vld [vmem:[%s1230 + $0xe8] sm:$0xff]
        %v1261 = vld [vmem:[%s1230 + $0xf0] sm:$0xff]
        %v1262 = vld [vmem:[%s1230 + $0xf8] sm:$0xff]
        %v1263 = vlaneseq
        %v1264 = vshrl.u32 %v1263, 7
        %v1265 = vsub.s32 0, %v1264
        %v1266 = vrot.slane %v423, %v1265
        %v1267 = vmul.f32 %v1231, %v1266
        %v1268 = vmul.f32 %v1232, %v1266
        %v1269 = vmul.f32 %v1233, %v1266
        %v1270 = vmul.f32 %v1234, %v1266
        %v1271 = vmul.f32 %v1235, %v1266
        %v1272 = vmul.f32 %v1236, %v1266
        %v1273 = vmul.f32 %v1237, %v1266
        %v1274 = vmul.f32 %v1238, %v1266
        %v1275 = vmul.f32 %v1239, %v1266
        %v1276 = vmul.f32 %v1240, %v1266
        %v1277 = vmul.f32 %v1241, %v1266
        %v1278 = vmul.f32 %v1242, %v1266
        %v1279 = vmul.f32 %v1243, %v1266
        %v1280 = vmul.f32 %v1244, %v1266
        %v1281 = vmul.f32 %v1245, %v1266
        %v1282 = vmul.f32 %v1246, %v1266
        %v1283 = vmul.f32 %v1247, %v1266
        %v1284 = vmul.f32 %v1248, %v1266
        %v1285 = vmul.f32 %v1249, %v1266
        %v1286 = vmul.f32 %v1250, %v1266
        %v1287 = vmul.f32 %v1251, %v1266
        %v1288 = vmul.f32 %v1252, %v1266
        %v1289 = vmul.f32 %v1253, %v1266
        %v1290 = vmul.f32 %v1254, %v1266
        %v1291 = vmul.f32 %v1255, %v1266
        %v1292 = vmul.f32 %v1256, %v1266
        %v1293 = vmul.f32 %v1257, %v1266
        %v1294 = vmul.f32 %v1258, %v1266
        %v1295 = vmul.f32 %v1259, %v1266
        %v1296 = vmul.f32 %v1260, %v1266
        %v1297 = vmul.f32 %v1261, %v1266
        %v1298 = vmul.f32 %v1262, %v1266
        %v1299 = vadd.f32 %v1198, %v1267
        %v1300 = vadd.f32 %v1199, %v1268
        %v1301 = vadd.f32 %v1200, %v1269
        %v1302 = vadd.f32 %v1201, %v1270
        %v1303 = vadd.f32 %v1202, %v1271
        %v1304 = vadd.f32 %v1203, %v1272
        %v1305 = vadd.f32 %v1204, %v1273
        %v1306 = vadd.f32 %v1205, %v1274
        %v1307 = vadd.f32 %v1206, %v1275
        %v1308 = vadd.f32 %v1207, %v1276
        %v1309 = vadd.f32 %v1208, %v1277
        %v1310 = vadd.f32 %v1209, %v1278
        %v1311 = vadd.f32 %v1210, %v1279
        %v1312 = vadd.f32 %v1211, %v1280
        %v1313 = vadd.f32 %v1212, %v1281
        %v1314 = vadd.f32 %v1213, %v1282
        %v1315 = vadd.f32 %v1214, %v1283
        %v1316 = vadd.f32 %v1215, %v1284
        %v1317 = vadd.f32 %v1216, %v1285
        %v1318 = vadd.f32 %v1217, %v1286
        %v1319 = vadd.f32 %v1218, %v1287
        %v1320 = vadd.f32 %v1219, %v1288
        %v1321 = vadd.f32 %v1220, %v1289
        %v1322 = vadd.f32 %v1221, %v1290
        %v1323 = vadd.f32 %v1222, %v1291
        %v1324 = vadd.f32 %v1223, %v1292
        %v1325 = vadd.f32 %v1224, %v1293
        %v1326 = vadd.f32 %v1225, %v1294
        %v1327 = vadd.f32 %v1226, %v1295
        %v1328 = vadd.f32 %v1227, %v1296
        %v1329 = vadd.f32 %v1228, %v1297
        %v1330 = vadd.f32 %v1229, %v1298
        %v1332 = vlaneseq
        %v1333 = vshrl.u32 %v1332, 7
        %v1334 = vsub.s32 0, %v1333
        %v1335 = vrot.slane %v424, %v1334
        %v1337 = vadd.f32 %v1299, %v1335
        %v1338 = vadd.f32 %v1300, %v1335
        %v1339 = vadd.f32 %v1301, %v1335
        %v1340 = vadd.f32 %v1302, %v1335
        %v1341 = vadd.f32 %v1303, %v1335
        %v1342 = vadd.f32 %v1304, %v1335
        %v1343 = vadd.f32 %v1305, %v1335
        %v1344 = vadd.f32 %v1306, %v1335
        %v1345 = vadd.f32 %v1307, %v1335
        %v1346 = vadd.f32 %v1308, %v1335
        %v1347 = vadd.f32 %v1309, %v1335
        %v1348 = vadd.f32 %v1310, %v1335
        %v1349 = vadd.f32 %v1311, %v1335
        %v1350 = vadd.f32 %v1312, %v1335
        %v1351 = vadd.f32 %v1313, %v1335
        %v1352 = vadd.f32 %v1314, %v1335
        %v1353 = vadd.f32 %v1315, %v1335
        %v1354 = vadd.f32 %v1316, %v1335
        %v1355 = vadd.f32 %v1317, %v1335
        %v1356 = vadd.f32 %v1318, %v1335
        %v1357 = vadd.f32 %v1319, %v1335
        %v1358 = vadd.f32 %v1320, %v1335
        %v1359 = vadd.f32 %v1321, %v1335
        %v1360 = vadd.f32 %v1322, %v1335
        %v1361 = vadd.f32 %v1323, %v1335
        %v1362 = vadd.f32 %v1324, %v1335
        %v1363 = vadd.f32 %v1325, %v1335
        %v1364 = vadd.f32 %v1326, %v1335
        %v1365 = vadd.f32 %v1327, %v1335
        %v1366 = vadd.f32 %v1328, %v1335
        %v1367 = vadd.f32 %v1329, %v1335
        %v1368 = vadd.f32 %v1330, %v1335
        %v1369 = vxor.u32 %v1337, 2147483648
        %v1370 = vxor.u32 %v1338, 2147483648
        %v1371 = vxor.u32 %v1339, 2147483648
        %v1372 = vxor.u32 %v1340, 2147483648
        %v1373 = vxor.u32 %v1341, 2147483648
        %v1374 = vxor.u32 %v1342, 2147483648
        %v1375 = vxor.u32 %v1343, 2147483648
        %v1376 = vxor.u32 %v1344, 2147483648
        %v1377 = vxor.u32 %v1345, 2147483648
        %v1378 = vxor.u32 %v1346, 2147483648
        %v1379 = vxor.u32 %v1347, 2147483648
        %v1380 = vxor.u32 %v1348, 2147483648
        %v1381 = vxor.u32 %v1349, 2147483648
        %v1382 = vxor.u32 %v1350, 2147483648
        %v1383 = vxor.u32 %v1351, 2147483648
        %v1384 = vxor.u32 %v1352, 2147483648
        %v1385 = vxor.u32 %v1353, 2147483648
        %v1386 = vxor.u32 %v1354, 2147483648
        %v1387 = vxor.u32 %v1355, 2147483648
        %v1388 = vxor.u32 %v1356, 2147483648
        %v1389 = vxor.u32 %v1357, 2147483648
        %v1390 = vxor.u32 %v1358, 2147483648
        %v1391 = vxor.u32 %v1359, 2147483648
        %v1392 = vxor.u32 %v1360, 2147483648
        %v1393 = vxor.u32 %v1361, 2147483648
        %v1394 = vxor.u32 %v1362, 2147483648
        %v1395 = vxor.u32 %v1363, 2147483648
        %v1396 = vxor.u32 %v1364, 2147483648
        %v1397 = vxor.u32 %v1365, 2147483648
        %v1398 = vxor.u32 %v1366, 2147483648
        %v1399 = vxor.u32 %v1367, 2147483648
        %v1400 = vxor.u32 %v1368, 2147483648
        %v1401 = vmul.f32 %v1369, 1.442695
        %v1402 = vpow.pop %v1401
        %v1403 = vmul.f32 %v1370, 1.442695
        %v1404 = vpow.pop %v1403
        %v1405 = vmul.f32 %v1371, 1.442695
        %v1406 = vpow.pop %v1405
        %v1407 = vmul.f32 %v1372, 1.442695
        %v1408 = vpow.pop %v1407
        %v1409 = vmul.f32 %v1373, 1.442695
        %v1410 = vpow.pop %v1409
        %v1411 = vmul.f32 %v1374, 1.442695
        %v1412 = vpow.pop %v1411
        %v1413 = vmul.f32 %v1375, 1.442695
        %v1414 = vpow.pop %v1413
        %v1415 = vmul.f32 %v1376, 1.442695
        %v1416 = vpow.pop %v1415
        %v1417 = vmul.f32 %v1377, 1.442695
        %v1418 = vpow.pop %v1417
        %v1419 = vmul.f32 %v1378, 1.442695
        %v1420 = vpow.pop %v1419
        %v1421 = vmul.f32 %v1379, 1.442695
        %v1422 = vpow.pop %v1421
        %v1423 = vmul.f32 %v1380, 1.442695
        %v1424 = vpow.pop %v1423
        %v1425 = vmul.f32 %v1381, 1.442695
        %v1426 = vpow.pop %v1425
        %v1427 = vmul.f32 %v1382, 1.442695
        %v1428 = vpow.pop %v1427
        %v1429 = vmul.f32 %v1383, 1.442695
        %v1430 = vpow.pop %v1429
        %v1431 = vmul.f32 %v1384, 1.442695
        %v1432 = vpow.pop %v1431
        %v1433 = vmul.f32 %v1385, 1.442695
        %v1434 = vpow.pop %v1433
        %v1435 = vmul.f32 %v1386, 1.442695
        %v1436 = vpow.pop %v1435
        %v1437 = vmul.f32 %v1387, 1.442695
        %v1438 = vpow.pop %v1437
        %v1439 = vmul.f32 %v1388, 1.442695
        %v1440 = vpow.pop %v1439
        %v1441 = vmul.f32 %v1389, 1.442695
        %v1442 = vpow.pop %v1441
        %v1443 = vmul.f32 %v1390, 1.442695
        %v1444 = vpow.pop %v1443
        %v1445 = vmul.f32 %v1391, 1.442695
        %v1446 = vpow.pop %v1445
        %v1447 = vmul.f32 %v1392, 1.442695
        %v1448 = vpow.pop %v1447
        %v1449 = vmul.f32 %v1393, 1.442695
        %v1450 = vpow.pop %v1449
        %v1451 = vmul.f32 %v1394, 1.442695
        %v1452 = vpow.pop %v1451
        %v1453 = vmul.f32 %v1395, 1.442695
        %v1454 = vpow.pop %v1453
        %v1455 = vmul.f32 %v1396, 1.442695
        %v1456 = vpow.pop %v1455
        %v1457 = vmul.f32 %v1397, 1.442695
        %v1458 = vpow.pop %v1457
        %v1459 = vmul.f32 %v1398, 1.442695
        %v1460 = vpow.pop %v1459
        %v1461 = vmul.f32 %v1399, 1.442695
        %v1462 = vpow.pop %v1461
        %v1463 = vmul.f32 %v1400, 1.442695
        %v1464 = vpow.pop %v1463
        %v1465 = vadd.f32 %v1402, 1.0
        %v1466 = vadd.f32 %v1404, 1.0
        %v1467 = vadd.f32 %v1406, 1.0
        %v1468 = vadd.f32 %v1408, 1.0
        %v1469 = vadd.f32 %v1410, 1.0
        %v1470 = vadd.f32 %v1412, 1.0
        %v1471 = vadd.f32 %v1414, 1.0
        %v1472 = vadd.f32 %v1416, 1.0
        %v1473 = vadd.f32 %v1418, 1.0
        %v1474 = vadd.f32 %v1420, 1.0
        %v1475 = vadd.f32 %v1422, 1.0
        %v1476 = vadd.f32 %v1424, 1.0
        %v1477 = vadd.f32 %v1426, 1.0
        %v1478 = vadd.f32 %v1428, 1.0
        %v1479 = vadd.f32 %v1430, 1.0
        %v1480 = vadd.f32 %v1432, 1.0
        %v1481 = vadd.f32 %v1434, 1.0
        %v1482 = vadd.f32 %v1436, 1.0
        %v1483 = vadd.f32 %v1438, 1.0
        %v1484 = vadd.f32 %v1440, 1.0
        %v1485 = vadd.f32 %v1442, 1.0
        %v1486 = vadd.f32 %v1444, 1.0
        %v1487 = vadd.f32 %v1446, 1.0
        %v1488 = vadd.f32 %v1448, 1.0
        %v1489 = vadd.f32 %v1450, 1.0
        %v1490 = vadd.f32 %v1452, 1.0
        %v1491 = vadd.f32 %v1454, 1.0
        %v1492 = vadd.f32 %v1456, 1.0
        %v1493 = vadd.f32 %v1458, 1.0
        %v1494 = vadd.f32 %v1460, 1.0
        %v1495 = vadd.f32 %v1462, 1.0
        %v1496 = vadd.f32 %v1464, 1.0
        %v1497 = vrcp.pop %v1465
        %v1498 = vmul.f32 1.0, %v1497
        %v1499 = vrcp.pop %v1466
        %v1500 = vmul.f32 1.0, %v1499
        %v1501 = vrcp.pop %v1467
        %v1502 = vmul.f32 1.0, %v1501
        %v1503 = vrcp.pop %v1468
        %v1504 = vmul.f32 1.0, %v1503
        %v1505 = vrcp.pop %v1469
        %v1506 = vmul.f32 1.0, %v1505
        %v1507 = vrcp.pop %v1470
        %v1508 = vmul.f32 1.0, %v1507
        %v1509 = vrcp.pop %v1471
        %v1510 = vmul.f32 1.0, %v1509
        %v1511 = vrcp.pop %v1472
        %v1512 = vmul.f32 1.0, %v1511
        %v1513 = vrcp.pop %v1473
        %v1514 = vmul.f32 1.0, %v1513
        %v1515 = vrcp.pop %v1474
        %v1516 = vmul.f32 1.0, %v1515
        %v1517 = vrcp.pop %v1475
        %v1518 = vmul.f32 1.0, %v1517
        %v1519 = vrcp.pop %v1476
        %v1520 = vmul.f32 1.0, %v1519
        %v1521 = vrcp.pop %v1477
        %v1522 = vmul.f32 1.0, %v1521
        %v1523 = vrcp.pop %v1478
        %v1524 = vmul.f32 1.0, %v1523
        %v1525 = vrcp.pop %v1479
        %v1526 = vmul.f32 1.0, %v1525
        %v1527 = vrcp.pop %v1480
        %v1528 = vmul.f32 1.0, %v1527
        %v1529 = vrcp.pop %v1481
        %v1530 = vmul.f32 1.0, %v1529
        %v1531 = vrcp.pop %v1482
        %v1532 = vmul.f32 1.0, %v1531
        %v1533 = vrcp.pop %v1483
        %v1534 = vmul.f32 1.0, %v1533
        %v1535 = vrcp.pop %v1484
        %v1536 = vmul.f32 1.0, %v1535
        %v1537 = vrcp.pop %v1485
        %v1538 = vmul.f32 1.0, %v1537
        %v1539 = vrcp.pop %v1486
        %v1540 = vmul.f32 1.0, %v1539
        %v1541 = vrcp.pop %v1487
        %v1542 = vmul.f32 1.0, %v1541
        %v1543 = vrcp.pop %v1488
        %v1544 = vmul.f32 1.0, %v1543
        %v1545 = vrcp.pop %v1489
        %v1546 = vmul.f32 1.0, %v1545
        %v1547 = vrcp.pop %v1490
        %v1548 = vmul.f32 1.0, %v1547
        %v1549 = vrcp.pop %v1491
        %v1550 = vmul.f32 1.0, %v1549
        %v1551 = vrcp.pop %v1492
        %v1552 = vmul.f32 1.0, %v1551
        %v1553 = vrcp.pop %v1493
        %v1554 = vmul.f32 1.0, %v1553
        %v1555 = vrcp.pop %v1494
        %v1556 = vmul.f32 1.0, %v1555
        %v1557 = vrcp.pop %v1495
        %v1558 = vmul.f32 1.0, %v1557
        %v1559 = vrcp.pop %v1496
        %v1560 = vmul.f32 1.0, %v1559
        %v1561 = vmul.f32 %v1337, %v1498
        %v1562 = vmul.f32 %v1338, %v1500
        %v1563 = vmul.f32 %v1339, %v1502
        %v1564 = vmul.f32 %v1340, %v1504
        %v1565 = vmul.f32 %v1341, %v1506
        %v1566 = vmul.f32 %v1342, %v1508
        %v1567 = vmul.f32 %v1343, %v1510
        %v1568 = vmul.f32 %v1344, %v1512
        %v1569 = vmul.f32 %v1345, %v1514
        %v1570 = vmul.f32 %v1346, %v1516
        %v1571 = vmul.f32 %v1347, %v1518
        %v1572 = vmul.f32 %v1348, %v1520
        %v1573 = vmul.f32 %v1349, %v1522
        %v1574 = vmul.f32 %v1350, %v1524
        %v1575 = vmul.f32 %v1351, %v1526
        %v1576 = vmul.f32 %v1352, %v1528
        %v1577 = vmul.f32 %v1353, %v1530
        %v1578 = vmul.f32 %v1354, %v1532
        %v1579 = vmul.f32 %v1355, %v1534
        %v1580 = vmul.f32 %v1356, %v1536
        %v1581 = vmul.f32 %v1357, %v1538
        %v1582 = vmul.f32 %v1358, %v1540
        %v1583 = vmul.f32 %v1359, %v1542
        %v1584 = vmul.f32 %v1360, %v1544
        %v1585 = vmul.f32 %v1361, %v1546
        %v1586 = vmul.f32 %v1362, %v1548
        %v1587 = vmul.f32 %v1363, %v1550
        %v1588 = vmul.f32 %v1364, %v1552
        %v1589 = vmul.f32 %v1365, %v1554
        %v1590 = vmul.f32 %v1366, %v1556
        %v1591 = vmul.f32 %v1367, %v1558
        %v1592 = vmul.f32 %v1368, %v1560
        %1593 = vst [vmem:[%s247] sm:$0xff] %v1561
        %1594 = vst [vmem:[%s247 + $0x8] sm:$0xff] %v1562
        %1595 = vst [vmem:[%s247 + $0x10] sm:$0xff] %v1563
        %1596 = vst [vmem:[%s247 + $0x18] sm:$0xff] %v1564
        %1597 = vst [vmem:[%s247 + $0x20] sm:$0xff] %v1565
        %1598 = vst [vmem:[%s247 + $0x28] sm:$0xff] %v1566
        %1599 = vst [vmem:[%s247 + $0x30] sm:$0xff] %v1567
        %1600 = vst [vmem:[%s247 + $0x38] sm:$0xff] %v1568
        %1601 = vst [vmem:[%s247 + $0x40] sm:$0xff] %v1569
        %1602 = vst [vmem:[%s247 + $0x48] sm:$0xff] %v1570
        %1603 = vst [vmem:[%s247 + $0x50] sm:$0xff] %v1571
        %1604 = vst [vmem:[%s247 + $0x58] sm:$0xff] %v1572
        %1605 = vst [vmem:[%s247 + $0x60] sm:$0xff] %v1573
        %1606 = vst [vmem:[%s247 + $0x68] sm:$0xff] %v1574
        %1607 = vst [vmem:[%s247 + $0x70] sm:$0xff] %v1575
        %1608 = vst [vmem:[%s247 + $0x78] sm:$0xff] %v1576
        %1609 = vst [vmem:[%s247 + $0x80] sm:$0xff] %v1577
        %1610 = vst [vmem:[%s247 + $0x88] sm:$0xff] %v1578
        %1611 = vst [vmem:[%s247 + $0x90] sm:$0xff] %v1579
        %1612 = vst [vmem:[%s247 + $0x98] sm:$0xff] %v1580
        %1613 = vst [vmem:[%s247 + $0xa0] sm:$0xff] %v1581
        %1614 = vst [vmem:[%s247 + $0xa8] sm:$0xff] %v1582
        %1615 = vst [vmem:[%s247 + $0xb0] sm:$0xff] %v1583
        %1616 = vst [vmem:[%s247 + $0xb8] sm:$0xff] %v1584
        %1617 = vst [vmem:[%s247 + $0xc0] sm:$0xff] %v1585
        %1618 = vst [vmem:[%s247 + $0xc8] sm:$0xff] %v1586
        %1619 = vst [vmem:[%s247 + $0xd0] sm:$0xff] %v1587
        %1620 = vst [vmem:[%s247 + $0xd8] sm:$0xff] %v1588
        %1621 = vst [vmem:[%s247 + $0xe0] sm:$0xff] %v1589
        %1622 = vst [vmem:[%s247 + $0xe8] sm:$0xff] %v1590
        %1623 = vst [vmem:[%s247 + $0xf0] sm:$0xff] %v1591
        %1624 = vst [vmem:[%s247 + $0xf8] sm:$0xff] %v1592
        %s1625 = sand.u32 %s132, 1
        %s1626 = scalar_lea.sflag [#allocation5], %s1625
        %s1627 = sand.u32 %s132, 1
        %s1628 = smul.addr %s1627, 256
        %s1629 = scalar_lea.vmem [#allocation8], %s1628
        // Predicated region
        $region41: #{tpu_custom_call.1} parent=31 // pred_check
          %p1630 = pneg %p142
        $region42: #{tpu_custom_call.1} parent=31 // pred_check_branch
          %1632 = sbr.rel (%p1630) target = $region44
        $region43: #{tpu_custom_call.1} parent=31 // pred_region
          %s1633 = smul.u32 16, %s28
          %s1635 = ssub.s32 4096, 4096
          %1636 = vsyncadd %s1626, %s1635
          %s1637 = smul.addr %s1633, 2
          %s1638 = sadd.s32 %s26, %s1637
          %s1639 = smul.addr %s27, 32
          %s1640 = sadd.s32 %s1638, %s1639
          %s1641 = smul.addr %s1640, 128
          %s1642 = scalar_lea.hbm %s3, %s1641
          %s1643 = sshll.u32 %s1629, 4
          %s1644 = int_to_ptr.vmem [resolvable:$true] %s1643
          %1649 = dma.vmem_to_hbm [thread:$0]  %s1644, 4096, %s1642, %s1626, 128, 128, 8
        $region44: #{tpu_custom_call.1} parent=31 // pred_fallthru
          _
      $region32: #{tpu_custom_call.1} parent=5 // pred_fallthru
        _
      %p1650 = scmp.le.s32.totalorder 2, %s16
      // Predicated region
      $region45: #{tpu_custom_call.1} parent=5 // pred_check
        %p1651 = pneg %p1650
      $region46: #{tpu_custom_call.1} parent=5 // pred_check_branch
        %1653 = sbr.rel (%p1651) target = $region48
      $region47: #{tpu_custom_call.1} parent=5 // pred_region
        %s1654 = ssub.s32 %s16, 2
        // Predicated region
        $region49: #{tpu_custom_call.1} parent=47 // pred_check
          %p1655 = pneg %p148
        $region50: #{tpu_custom_call.1} parent=47 // pred_check_branch
          %1657 = sbr.rel (%p1655) target = $region52
        $region51: #{tpu_custom_call.1} parent=47 // pred_region
          %s1658 = sand.u32 %s133, 1
          %s1659 = scalar_lea.sflag [#allocation5], %s1658
          %s1660 = sand.u32 %s133, 1
          %s1661 = smul.addr %s1660, 256
          %s1662 = scalar_lea.vmem [#allocation8], %s1661
          %1663 = dma.done %s1659, 4096
        $region52: #{tpu_custom_call.1} parent=47 // pred_fallthru
          _
      $region48: #{tpu_custom_call.1} parent=5 // pred_fallthru
        _
    $region6: #{tpu_custom_call.1} parent=1 // loop_footer
      %s20 = sadd.s32 1, %s16
    $region7: #{tpu_custom_call.1} parent=1 // loop_footer_branch
      %15 = sbr.rel target = $region3
    $region8: #{tpu_custom_call.1} parent=1 // loop_exit
      _
    %1664 = vsyncpa [#allocation4], 1
    %s1665 = scalar_lea.sflag [#allocation4], 1
    %1666 = vsyncpa %s1665, 1
    %1667 = vsyncpa [#allocation7], 1
    %1668 = vsyncpa [#allocation5], 1
    %s1669 = scalar_lea.sflag [#allocation5], 1
    %1670 = vsyncpa %s1669, 1

</llo_original>
